<compile_context>
chip_gen: v7x
topology: tpu7x:2x2x1
jax: 0.10.0
libtpu: 0.0.40
codegen_flags: <defaults>
</compile_context>

<pallas_src>
import jax
import jax.numpy as jnp
from jax import lax
from jax.experimental import pallas as pl
from jax.experimental.pallas import tpu as pltpu

_BN_EPS = 1e-5


def _block_kernel(p0_ref,
                  wds_ref, bds_ref,          # fused [down1 | side] weights / biases
                  wd2_ref, bd2_ref,
                  wr1_ref, br1_ref, wr2_ref, br2_ref,
                  o_ref, pad_ref, patch_ref):
    """One batch element of ResNetAttentionBlock_big (attention == identity).

    p0_ref   : (1, M, 9*Cin)   im2col patches of x for the 3x3 / stride-2 conv
    wds_ref  : (9*Cin, 2*Cout) [downsample-conv1 | side-conv] weights (BN folded);
                               side weight lives only in the centre-tap rows.
    bds_ref  : (1, 2*Cout)     fused biases for the two branches
    wd2/wr1/wr2 : (9*Cout, Cout) flattened 3x3/stride-1 conv weights
    o_ref    : (1, M, Cout)
    pad_ref  : (Ho+2, Wo+2, Cout) f32 scratch; zero border written once per step
    patch_ref: (M, 9*Cout)     f32 im2col scratch for the in-kernel stride-1 convs
    """
    Ho = pad_ref.shape[0] - 2
    Wo = pad_ref.shape[1] - 2
    C = pad_ref.shape[2]
    M = Ho * Wo
    Cout = o_ref.shape[-1]

    def mm(a, w_ref, b_ref):
        # One matmul per conv, bias fused into the epilogue.  For large C on
        # v6e/v7x cast a / w to bfloat16 here (keep f32 accumulation).
        return jnp.dot(a, w_ref[...].astype(jnp.float32),
                       preferred_element_type=jnp.float32) + \
               b_ref[...].astype(jnp.float32)

    def im2col3x3(a_flat):
        # a_flat: (M, C) f32, row-major over (Ho, Wo).  Writes only the interior
        # of pad_ref (border stays zero) and fills patch_ref -> (M, 9*C).
        pad_ref[1:Ho + 1, 1:Wo + 1, :] = a_flat.reshape(Ho, Wo, C)
        for ky in range(3):
            for kx in range(3):
                c0 = (ky * 3 + kx) * C
                patch_ref[:, c0:c0 + C] = (
                    pad_ref[ky:ky + Ho, kx:kx + Wo, :].reshape(M, C))
        return patch_ref[...]

    # Zero the padded scratch ONCE; each conv rewrites only the interior.
    pad_ref[...] = jnp.zeros_like(pad_ref)

    # ---- fused: downsample conv3x3/s2 (+BN) and side conv1x1/s2 (+BN) share
    #      the same im2col LHS -> single matmul, split the output columns ----
    ds = mm(p0_ref[0].astype(jnp.float32), wds_ref, bds_ref)
    d = jnp.maximum(ds[:, :Cout], 0.0)     # downsample branch, ReLU
    side = ds[:, Cout:]                    # side branch (no activation)

    # ---- downsample conv3x3/s1 +BN+relu ----
    d = jnp.maximum(mm(im2col3x3(d), wd2_ref, bd2_ref), 0.0)

    y1 = d + side

    # ---- ResNetBlock_small_pre (nout=1): y2 = y1 + conv(relu(conv(y1))) ----
    r = jnp.maximum(mm(im2col3x3(y1), wr1_ref, br1_ref), 0.0)
    r = mm(im2col3x3(r), wr2_ref, br2_ref)

    # ---- attention(y1 + y2) == y1 + (y1 + r) == 2*y1 + r (attention = identity) ----
    o_ref[0] = (2.0 * y1 + r).astype(o_ref.dtype)


def _fold_bn(w, bn_params, eps=_BN_EPS):
    """Fold eval-mode BatchNorm into a bias-free conv: returns (w', b')."""
    gamma, beta, mean, var = bn_params
    scale = gamma / jnp.sqrt(var + eps)
    return w * scale, beta - mean * scale


def resnet_attention_block_big(x_nchw, params):
    """x_nchw: (N, Cin, H, W); conv weights in HWIO layout."""
    N, Cin, H, W = x_nchw.shape
    assert H % 2 == 0 and W % 2 == 0, "even spatial dims expected for stride-2"
    Cout = params["w_down1"].shape[-1]
    Ho, Wo = H // 2, W // 2
    M = Ho * Wo

    x = jnp.transpose(x_nchw, (0, 2, 3, 1))  # NCHW -> NHWC

    # Fold eval-mode BN into the preceding convs (wrapper-side, done once).
    wd1, bd1 = _fold_bn(params["w_down1"], params["bn_down1"])
    wd2, bd2 = _fold_bn(params["w_down2"], params["bn_down2"])
    ws, bs = _fold_bn(params["w_side"], params["bn_side"])
    wr1, br1 = params["w_res1"], params["b_res1"]
    wr2, br2 = params["w_res2"], params["b_res2"]

    # Layout plumbing (no compute): im2col taps for the 3x3/stride-2, pad=1 conv.
    # The centre tap (ky=kx=1) equals x[:, ::2, ::2, :], so it also feeds the
    # 1x1/stride-2 side conv -- no separate strided input needed.
    xp = jnp.pad(x, ((0, 0), (1, 1), (1, 1), (0, 0)))
    taps = [xp[:, ky:ky + H:2, kx:kx + W:2, :]
            for ky in range(3) for kx in range(3)]
    patches0 = jnp.concatenate(taps, axis=-1).reshape(N, M, 9 * Cin)

    # Fuse [downsample-conv1 | side-conv] into one weight matrix: the side 1x1
    # weight occupies only the centre-tap rows (zero elsewhere).
    wds = jnp.zeros((9 * Cin, 2 * Cout), jnp.float32)
    wds = wds.at[:, :Cout].set(wd1.reshape(9 * Cin, Cout))
    wds = wds.at[4 * Cin:5 * Cin, Cout:].set(ws.reshape(Cin, Cout))
    bds = jnp.concatenate([bd1, bs]).reshape(1, 2 * Cout)

    # Flatten the remaining conv weights for the single-matmul (im2col) form.
    wd2k = wd2.reshape(9 * Cout, Cout)
    wr1k = wr1.reshape(9 * Cout, Cout)
    wr2k = wr2.reshape(9 * Cout, Cout)
    as_row = lambda b: b.reshape(1, Cout)

    full = lambda shape: pl.BlockSpec(shape, lambda n: (0,) * len(shape))

    out = pl.pallas_call(
        _block_kernel,
        out_shape=jax.ShapeDtypeStruct((N, M, Cout), x.dtype),
        grid_spec=pltpu.PrefetchScalarGridSpec(
            num_scalar_prefetch=0,
            grid=(N,),
            in_specs=[
                pl.BlockSpec((1, M, 9 * Cin), lambda n: (n, 0, 0)),
                full((9 * Cin, 2 * Cout)), full((1, 2 * Cout)),
                full((9 * Cout, Cout)), full((1, Cout)),
                full((9 * Cout, Cout)), full((1, Cout)),
                full((9 * Cout, Cout)), full((1, Cout)),
            ],
            out_specs=pl.BlockSpec((1, M, Cout), lambda n: (n, 0, 0)),
            scratch_shapes=[
                pltpu.VMEM((Ho + 2, Wo + 2, Cout), jnp.float32),
                pltpu.VMEM((M, 9 * Cout), jnp.float32),
            ],
        ),
        compiler_params=pltpu.CompilerParams(
            dimension_semantics=("parallel",)),  # 2 steps -> both v7x TCs
    )(patches0, wds, bds, wd2k, as_row(bd2),
      wr1k, as_row(br1), wr2k, as_row(br2))

    out = out.reshape(N, Ho, Wo, Cout)
    return jnp.transpose(out, (0, 3, 1, 2))  # NHWC -> NCHW


def _reference(x_nchw, params):
    """Plain-JAX reference (NHWC convs, explicit BN) for correctness checking."""
    x = jnp.transpose(x_nchw, (0, 2, 3, 1))
    dn = ("NHWC", "HWIO", "NHWC")

    def conv(inp, w, stride, pad):
        return lax.conv_general_dilated(
            inp, w, (stride, stride), pad, dimension_numbers=dn,
            precision=lax.Precision.HIGHEST)

    def bn(v, p):
        gamma, beta, mean, var = p
        return gamma * (v - mean) / jnp.sqrt(var + _BN_EPS) + beta

    same = [(1, 1), (1, 1)]
    d = jax.nn.relu(bn(conv(x, params["w_down1"], 2, same), params["bn_down1"]))
    d = jax.nn.relu(bn(conv(d, params["w_down2"], 1, same), params["bn_down2"]))
    s = bn(conv(x, params["w_side"], 2, [(0, 0), (0, 0)]), params["bn_side"])
    y1 = d + s
    r = jax.nn.relu(conv(y1, params["w_res1"], 1, same) + params["b_res1"])
    r = conv(r, params["w_res2"], 1, same) + params["b_res2"]
    y2 = y1 + r
    return jnp.transpose(y1 + y2, (0, 3, 1, 2))  # attention == identity


if __name__ == "__main__":
    N, Cin, Cout, H, W = 2, 4, 8, 16, 16  # small shapes consistent with the module

    key = jax.random.PRNGKey(0)
    keys = jax.random.split(key, 11)

    def conv_w(k, kh, kw, ci, co):
        bound = 1.0 / (ci * kh * kw) ** 0.5
        return jax.random.uniform(k, (kh, kw, ci, co), jnp.float32, -bound, bound)

    def bn_params(k, c):
        k1, k2, k3, k4 = jax.random.split(k, 4)
        return (jax.random.uniform(k1, (c,), jnp.float32, 0.5, 1.5),   # gamma
                0.1 * jax.random.normal(k2, (c,), jnp.float32),        # beta
                0.1 * jax.random.normal(k3, (c,), jnp.float32),        # running_mean
                jax.random.uniform(k4, (c,), jnp.float32, 0.5, 1.5))   # running_var

    x = jax.random.normal(keys[0], (N, Cin, H, W), dtype=jnp.float32)

    bound_r = 1.0 / (Cout * 9) ** 0.5
    params = {
        "w_down1": conv_w(keys[1], 3, 3, Cin, Cout),
        "bn_down1": bn_params(keys[2], Cout),
        "w_down2": conv_w(keys[3], 3, 3, Cout, Cout),
        "bn_down2": bn_params(keys[4], Cout),
        "w_side": conv_w(keys[5], 1, 1, Cin, Cout),
        "bn_side": bn_params(keys[6], Cout),
        "w_res1": conv_w(keys[7], 3, 3, Cout, Cout),
        "b_res1": jax.random.uniform(keys[8], (Cout,), jnp.float32, -bound_r, bound_r),
        "w_res2": conv_w(keys[9], 3, 3, Cout, Cout),
        "b_res2": jax.random.uniform(keys[10], (Cout,), jnp.float32, -bound_r, bound_r),
    }

    out = resnet_attention_block_big(x, params)
    out = jax.block_until_ready(out)

    ref = _reference(x, params)
    assert out.shape == (N, Cout, H // 2, W // 2)
    assert jnp.allclose(out, ref, atol=1e-3, rtol=1e-3), (
        f"mismatch vs reference: max abs err {jnp.max(jnp.abs(out - ref)):.3e}")

    print("KERNEL_OK")
</pallas_src>

<mosaic_0001>
module attributes {stable_mosaic.version = 11 : i64} {
  func.func @_block_kernel(%arg0: i32, %arg1: memref<1x64x36xf32, #tpu.memory_space<vmem>>, %arg2: memref<36x16xf32, #tpu.memory_space<vmem>>, %arg3: memref<1x16xf32, #tpu.memory_space<vmem>>, %arg4: memref<72x8xf32, #tpu.memory_space<vmem>>, %arg5: memref<1x8xf32, #tpu.memory_space<vmem>>, %arg6: memref<72x8xf32, #tpu.memory_space<vmem>>, %arg7: memref<1x8xf32, #tpu.memory_space<vmem>>, %arg8: memref<72x8xf32, #tpu.memory_space<vmem>>, %arg9: memref<1x8xf32, #tpu.memory_space<vmem>>, %arg10: memref<1x64x8xf32, #tpu.memory_space<vmem>>, %arg11: memref<10x10x8xf32, #tpu.memory_space<vmem>>, %arg12: memref<64x72xf32, #tpu.memory_space<vmem>>) attributes {dimension_semantics = [#tpu.dimension_semantics<parallel>], iteration_bounds = array<i64: 2>, scalar_prefetch = 0 : i64, scratch_operands = 2 : i64, tpu.core_type = #tpu.core_type<tc>, window_params = [{transform_indices = @transform_0, window_bounds = array<i64: 1, 64, 36>}, {pipeline_mode = #tpu.pipeline_mode<synchronous>, transform_indices = @transform_1, window_bounds = array<i64: 36, 16>}, {pipeline_mode = #tpu.pipeline_mode<synchronous>, transform_indices = @transform_2, window_bounds = array<i64: 1, 16>}, {pipeline_mode = #tpu.pipeline_mode<synchronous>, transform_indices = @transform_3, window_bounds = array<i64: 72, 8>}, {pipeline_mode = #tpu.pipeline_mode<synchronous>, transform_indices = @transform_4, window_bounds = array<i64: 1, 8>}, {pipeline_mode = #tpu.pipeline_mode<synchronous>, transform_indices = @transform_5, window_bounds = array<i64: 72, 8>}, {pipeline_mode = #tpu.pipeline_mode<synchronous>, transform_indices = @transform_6, window_bounds = array<i64: 1, 8>}, {pipeline_mode = #tpu.pipeline_mode<synchronous>, transform_indices = @transform_7, window_bounds = array<i64: 72, 8>}, {pipeline_mode = #tpu.pipeline_mode<synchronous>, transform_indices = @transform_8, window_bounds = array<i64: 1, 8>}, {transform_indices = @transform_9, window_bounds = array<i64: 1, 64, 8>}]} {
    %cst = arith.constant 0.000000e+00 : f32
    %0 = vector.broadcast %cst : f32 to vector<10x10x8xf32>
    %c0 = arith.constant 0 : index
    %c0_0 = arith.constant 0 : index
    %c0_1 = arith.constant 0 : index
    %1 = vector.load %arg11[%c0, %c0_0, %c0_1] : memref<10x10x8xf32, #tpu.memory_space<vmem>>, vector<10x10x8xf32>
    tpu.vector_store %arg11[%c0, %c0_0, %c0_1], %0 {strides = array<i32>} : memref<10x10x8xf32, #tpu.memory_space<vmem>>, vector<10x10x8xf32>,
    %c0_2 = arith.constant 0 : index
    %c0_3 = arith.constant 0 : index
    %c0_4 = arith.constant 0 : index
    %2 = vector.load %arg1[%c0_2, %c0_3, %c0_4] : memref<1x64x36xf32, #tpu.memory_space<vmem>>, vector<1x64x36xf32>
    %3 = vector.shape_cast %2 : vector<1x64x36xf32> to vector<64x36xf32>
    %c0_5 = arith.constant 0 : index
    %c0_6 = arith.constant 0 : index
    %4 = vector.load %arg2[%c0_5, %c0_6] : memref<36x16xf32, #tpu.memory_space<vmem>>, vector<36x16xf32>
    %cst_7 = arith.constant dense<0.000000e+00> : vector<64x16xf32>
    %5 = tpu.matmul %3, %4, %cst_7 {dimension_numbers = #tpu.dot_dimension_numbers<[1], [0], [0], [1], [0, 0, 1, 1], [], []>} : vector<64x36xf32>, vector<36x16xf32>, vector<64x16xf32> -> vector<64x16xf32>
    %c0_8 = arith.constant 0 : index
    %c0_9 = arith.constant 0 : index
    %6 = vector.load %arg3[%c0_8, %c0_9] : memref<1x16xf32, #tpu.memory_space<vmem>>, vector<1x16xf32>
    %7 = vector.broadcast %6 : vector<1x16xf32> to vector<64x16xf32>
    %8 = arith.addf %5, %7 : vector<64x16xf32>
    %9 = vector.extract_strided_slice %8 {offsets = [0, 0], sizes = [64, 8], strides = [1, 1]} : vector<64x16xf32> to vector<64x8xf32>
    %cst_10 = arith.constant 0.000000e+00 : f32
    %10 = vector.broadcast %cst_10 : f32 to vector<64x8xf32>
    %11 = arith.maximumf %9, %10 : vector<64x8xf32>
    %12 = vector.extract_strided_slice %8 {offsets = [0, 8], sizes = [64, 8], strides = [1, 1]} : vector<64x16xf32> to vector<64x8xf32>
    %13 = vector.shape_cast %11 : vector<64x8xf32> to vector<8x8x8xf32>
    %c1 = arith.constant 1 : index
    %c1_11 = arith.constant 1 : index
    %c0_12 = arith.constant 0 : index
    %14 = vector.load %arg11[%c1, %c1_11, %c0_12] : memref<10x10x8xf32, #tpu.memory_space<vmem>>, vector<8x8x8xf32>
    tpu.vector_store %arg11[%c1, %c1_11, %c0_12], %13 {strides = array<i32>} : memref<10x10x8xf32, #tpu.memory_space<vmem>>, vector<8x8x8xf32>,
    %c0_13 = arith.constant 0 : index
    %c0_14 = arith.constant 0 : index
    %c0_15 = arith.constant 0 : index
    %15 = vector.load %arg11[%c0_13, %c0_14, %c0_15] : memref<10x10x8xf32, #tpu.memory_space<vmem>>, vector<8x8x8xf32>
    %16 = vector.shape_cast %15 : vector<8x8x8xf32> to vector<64x8xf32>
    %c0_16 = arith.constant 0 : index
    %c0_17 = arith.constant 0 : index
    %17 = vector.load %arg12[%c0_16, %c0_17] : memref<64x72xf32, #tpu.memory_space<vmem>>, vector<64x8xf32>
    tpu.vector_store %arg12[%c0_16, %c0_17], %16 {strides = array<i32>} : memref<64x72xf32, #tpu.memory_space<vmem>>, vector<64x8xf32>,
    %c0_18 = arith.constant 0 : index
    %c1_19 = arith.constant 1 : index
    %c0_20 = arith.constant 0 : index
    %18 = vector.load %arg11[%c0_18, %c1_19, %c0_20] : memref<10x10x8xf32, #tpu.memory_space<vmem>>, vector<8x8x8xf32>
    %19 = vector.shape_cast %18 : vector<8x8x8xf32> to vector<64x8xf32>
    %c0_21 = arith.constant 0 : index
    %c8 = arith.constant 8 : index
    %20 = vector.load %arg12[%c0_21, %c8] : memref<64x72xf32, #tpu.memory_space<vmem>>, vector<64x8xf32>
    tpu.vector_store %arg12[%c0_21, %c8], %19 {strides = array<i32>} : memref<64x72xf32, #tpu.memory_space<vmem>>, vector<64x8xf32>,
    %c0_22 = arith.constant 0 : index
    %c2 = arith.constant 2 : index
    %c0_23 = arith.constant 0 : index
    %21 = vector.load %arg11[%c0_22, %c2, %c0_23] : memref<10x10x8xf32, #tpu.memory_space<vmem>>, vector<8x8x8xf32>
    %22 = vector.shape_cast %21 : vector<8x8x8xf32> to vector<64x8xf32>
    %c0_24 = arith.constant 0 : index
    %c16 = arith.constant 16 : index
    %23 = vector.load %arg12[%c0_24, %c16] : memref<64x72xf32, #tpu.memory_space<vmem>>, vector<64x8xf32>
    tpu.vector_store %arg12[%c0_24, %c16], %22 {strides = array<i32>} : memref<64x72xf32, #tpu.memory_space<vmem>>, vector<64x8xf32>,
    %c1_25 = arith.constant 1 : index
    %c0_26 = arith.constant 0 : index
    %c0_27 = arith.constant 0 : index
    %24 = vector.load %arg11[%c1_25, %c0_26, %c0_27] : memref<10x10x8xf32, #tpu.memory_space<vmem>>, vector<8x8x8xf32>
    %25 = vector.shape_cast %24 : vector<8x8x8xf32> to vector<64x8xf32>
    %c0_28 = arith.constant 0 : index
    %c24 = arith.constant 24 : index
    %26 = vector.load %arg12[%c0_28, %c24] : memref<64x72xf32, #tpu.memory_space<vmem>>, vector<64x8xf32>
    tpu.vector_store %arg12[%c0_28, %c24], %25 {strides = array<i32>} : memref<64x72xf32, #tpu.memory_space<vmem>>, vector<64x8xf32>,
    %c1_29 = arith.constant 1 : index
    %c1_30 = arith.constant 1 : index
    %c0_31 = arith.constant 0 : index
    %27 = vector.load %arg11[%c1_29, %c1_30, %c0_31] : memref<10x10x8xf32, #tpu.memory_space<vmem>>, vector<8x8x8xf32>
    %28 = vector.shape_cast %27 : vector<8x8x8xf32> to vector<64x8xf32>
    %c0_32 = arith.constant 0 : index
    %c32 = arith.constant 32 : index
    %29 = vector.load %arg12[%c0_32, %c32] : memref<64x72xf32, #tpu.memory_space<vmem>>, vector<64x8xf32>
    tpu.vector_store %arg12[%c0_32, %c32], %28 {strides = array<i32>} : memref<64x72xf32, #tpu.memory_space<vmem>>, vector<64x8xf32>,
    %c1_33 = arith.constant 1 : index
    %c2_34 = arith.constant 2 : index
    %c0_35 = arith.constant 0 : index
    %30 = vector.load %arg11[%c1_33, %c2_34, %c0_35] : memref<10x10x8xf32, #tpu.memory_space<vmem>>, vector<8x8x8xf32>
    %31 = vector.shape_cast %30 : vector<8x8x8xf32> to vector<64x8xf32>
    %c0_36 = arith.constant 0 : index
    %c40 = arith.constant 40 : index
    %32 = vector.load %arg12[%c0_36, %c40] : memref<64x72xf32, #tpu.memory_space<vmem>>, vector<64x8xf32>
    tpu.vector_store %arg12[%c0_36, %c40], %31 {strides = array<i32>} : memref<64x72xf32, #tpu.memory_space<vmem>>, vector<64x8xf32>,
    %c2_37 = arith.constant 2 : index
    %c0_38 = arith.constant 0 : index
    %c0_39 = arith.constant 0 : index
    %33 = vector.load %arg11[%c2_37, %c0_38, %c0_39] : memref<10x10x8xf32, #tpu.memory_space<vmem>>, vector<8x8x8xf32>
    %34 = vector.shape_cast %33 : vector<8x8x8xf32> to vector<64x8xf32>
    %c0_40 = arith.constant 0 : index
    %c48 = arith.constant 48 : index
    %35 = vector.load %arg12[%c0_40, %c48] : memref<64x72xf32, #tpu.memory_space<vmem>>, vector<64x8xf32>
    tpu.vector_store %arg12[%c0_40, %c48], %34 {strides = array<i32>} : memref<64x72xf32, #tpu.memory_space<vmem>>, vector<64x8xf32>,
    %c2_41 = arith.constant 2 : index
    %c1_42 = arith.constant 1 : index
    %c0_43 = arith.constant 0 : index
    %36 = vector.load %arg11[%c2_41, %c1_42, %c0_43] : memref<10x10x8xf32, #tpu.memory_space<vmem>>, vector<8x8x8xf32>
    %37 = vector.shape_cast %36 : vector<8x8x8xf32> to vector<64x8xf32>
    %c0_44 = arith.constant 0 : index
    %c56 = arith.constant 56 : index
    %38 = vector.load %arg12[%c0_44, %c56] : memref<64x72xf32, #tpu.memory_space<vmem>>, vector<64x8xf32>
    tpu.vector_store %arg12[%c0_44, %c56], %37 {strides = array<i32>} : memref<64x72xf32, #tpu.memory_space<vmem>>, vector<64x8xf32>,
    %c2_45 = arith.constant 2 : index
    %c2_46 = arith.constant 2 : index
    %c0_47 = arith.constant 0 : index
    %39 = vector.load %arg11[%c2_45, %c2_46, %c0_47] : memref<10x10x8xf32, #tpu.memory_space<vmem>>, vector<8x8x8xf32>
    %40 = vector.shape_cast %39 : vector<8x8x8xf32> to vector<64x8xf32>
    %c0_48 = arith.constant 0 : index
    %c64 = arith.constant 64 : index
    %41 = vector.load %arg12[%c0_48, %c64] : memref<64x72xf32, #tpu.memory_space<vmem>>, vector<64x8xf32>
    tpu.vector_store %arg12[%c0_48, %c64], %40 {strides = array<i32>} : memref<64x72xf32, #tpu.memory_space<vmem>>, vector<64x8xf32>,
    %c0_49 = arith.constant 0 : index
    %c0_50 = arith.constant 0 : index
    %42 = vector.load %arg12[%c0_49, %c0_50] : memref<64x72xf32, #tpu.memory_space<vmem>>, vector<64x72xf32>
    %c0_51 = arith.constant 0 : index
    %c0_52 = arith.constant 0 : index
    %43 = vector.load %arg4[%c0_51, %c0_52] : memref<72x8xf32, #tpu.memory_space<vmem>>, vector<72x8xf32>
    %cst_53 = arith.constant dense<0.000000e+00> : vector<64x8xf32>
    %44 = tpu.matmul %42, %43, %cst_53 {dimension_numbers = #tpu.dot_dimension_numbers<[1], [0], [0], [1], [0, 0, 1, 1], [], []>} : vector<64x72xf32>, vector<72x8xf32>, vector<64x8xf32> -> vector<64x8xf32>
    %c0_54 = arith.constant 0 : index
    %c0_55 = arith.constant 0 : index
    %45 = vector.load %arg5[%c0_54, %c0_55] : memref<1x8xf32, #tpu.memory_space<vmem>>, vector<1x8xf32>
    %46 = vector.broadcast %45 : vector<1x8xf32> to vector<64x8xf32>
    %47 = arith.addf %44, %46 : vector<64x8xf32>
    %cst_56 = arith.constant 0.000000e+00 : f32
    %48 = vector.broadcast %cst_56 : f32 to vector<64x8xf32>
    %49 = arith.maximumf %47, %48 : vector<64x8xf32>
    %50 = arith.addf %49, %12 : vector<64x8xf32>
    %51 = vector.shape_cast %50 : vector<64x8xf32> to vector<8x8x8xf32>
    %c1_57 = arith.constant 1 : index
    %c1_58 = arith.constant 1 : index
    %c0_59 = arith.constant 0 : index
    %52 = vector.load %arg11[%c1_57, %c1_58, %c0_59] : memref<10x10x8xf32, #tpu.memory_space<vmem>>, vector<8x8x8xf32>
    tpu.vector_store %arg11[%c1_57, %c1_58, %c0_59], %51 {strides = array<i32>} : memref<10x10x8xf32, #tpu.memory_space<vmem>>, vector<8x8x8xf32>,
    %c0_60 = arith.constant 0 : index
    %c0_61 = arith.constant 0 : index
    %c0_62 = arith.constant 0 : index
    %53 = vector.load %arg11[%c0_60, %c0_61, %c0_62] : memref<10x10x8xf32, #tpu.memory_space<vmem>>, vector<8x8x8xf32>
    %54 = vector.shape_cast %53 : vector<8x8x8xf32> to vector<64x8xf32>
    %c0_63 = arith.constant 0 : index
    %c0_64 = arith.constant 0 : index
    %55 = vector.load %arg12[%c0_63, %c0_64] : memref<64x72xf32, #tpu.memory_space<vmem>>, vector<64x8xf32>
    tpu.vector_store %arg12[%c0_63, %c0_64], %54 {strides = array<i32>} : memref<64x72xf32, #tpu.memory_space<vmem>>, vector<64x8xf32>,
    %c0_65 = arith.constant 0 : index
    %c1_66 = arith.constant 1 : index
    %c0_67 = arith.constant 0 : index
    %56 = vector.load %arg11[%c0_65, %c1_66, %c0_67] : memref<10x10x8xf32, #tpu.memory_space<vmem>>, vector<8x8x8xf32>
    %57 = vector.shape_cast %56 : vector<8x8x8xf32> to vector<64x8xf32>
    %c0_68 = arith.constant 0 : index
    %c8_69 = arith.constant 8 : index
    %58 = vector.load %arg12[%c0_68, %c8_69] : memref<64x72xf32, #tpu.memory_space<vmem>>, vector<64x8xf32>
    tpu.vector_store %arg12[%c0_68, %c8_69], %57 {strides = array<i32>} : memref<64x72xf32, #tpu.memory_space<vmem>>, vector<64x8xf32>,
    %c0_70 = arith.constant 0 : index
    %c2_71 = arith.constant 2 : index
    %c0_72 = arith.constant 0 : index
    %59 = vector.load %arg11[%c0_70, %c2_71, %c0_72] : memref<10x10x8xf32, #tpu.memory_space<vmem>>, vector<8x8x8xf32>
    %60 = vector.shape_cast %59 : vector<8x8x8xf32> to vector<64x8xf32>
    %c0_73 = arith.constant 0 : index
    %c16_74 = arith.constant 16 : index
    %61 = vector.load %arg12[%c0_73, %c16_74] : memref<64x72xf32, #tpu.memory_space<vmem>>, vector<64x8xf32>
    tpu.vector_store %arg12[%c0_73, %c16_74], %60 {strides = array<i32>} : memref<64x72xf32, #tpu.memory_space<vmem>>, vector<64x8xf32>,
    %c1_75 = arith.constant 1 : index
    %c0_76 = arith.constant 0 : index
    %c0_77 = arith.constant 0 : index
    %62 = vector.load %arg11[%c1_75, %c0_76, %c0_77] : memref<10x10x8xf32, #tpu.memory_space<vmem>>, vector<8x8x8xf32>
    %63 = vector.shape_cast %62 : vector<8x8x8xf32> to vector<64x8xf32>
    %c0_78 = arith.constant 0 : index
    %c24_79 = arith.constant 24 : index
    %64 = vector.load %arg12[%c0_78, %c24_79] : memref<64x72xf32, #tpu.memory_space<vmem>>, vector<64x8xf32>
    tpu.vector_store %arg12[%c0_78, %c24_79], %63 {strides = array<i32>} : memref<64x72xf32, #tpu.memory_space<vmem>>, vector<64x8xf32>,
    %c1_80 = arith.constant 1 : index
    %c1_81 = arith.constant 1 : index
    %c0_82 = arith.constant 0 : index
    %65 = vector.load %arg11[%c1_80, %c1_81, %c0_82] : memref<10x10x8xf32, #tpu.memory_space<vmem>>, vector<8x8x8xf32>
    %66 = vector.shape_cast %65 : vector<8x8x8xf32> to vector<64x8xf32>
    %c0_83 = arith.constant 0 : index
    %c32_84 = arith.constant 32 : index
    %67 = vector.load %arg12[%c0_83, %c32_84] : memref<64x72xf32, #tpu.memory_space<vmem>>, vector<64x8xf32>
    tpu.vector_store %arg12[%c0_83, %c32_84], %66 {strides = array<i32>} : memref<64x72xf32, #tpu.memory_space<vmem>>, vector<64x8xf32>,
    %c1_85 = arith.constant 1 : index
    %c2_86 = arith.constant 2 : index
    %c0_87 = arith.constant 0 : index
    %68 = vector.load %arg11[%c1_85, %c2_86, %c0_87] : memref<10x10x8xf32, #tpu.memory_space<vmem>>, vector<8x8x8xf32>
    %69 = vector.shape_cast %68 : vector<8x8x8xf32> to vector<64x8xf32>
    %c0_88 = arith.constant 0 : index
    %c40_89 = arith.constant 40 : index
    %70 = vector.load %arg12[%c0_88, %c40_89] : memref<64x72xf32, #tpu.memory_space<vmem>>, vector<64x8xf32>
    tpu.vector_store %arg12[%c0_88, %c40_89], %69 {strides = array<i32>} : memref<64x72xf32, #tpu.memory_space<vmem>>, vector<64x8xf32>,
    %c2_90 = arith.constant 2 : index
    %c0_91 = arith.constant 0 : index
    %c0_92 = arith.constant 0 : index
    %71 = vector.load %arg11[%c2_90, %c0_91, %c0_92] : memref<10x10x8xf32, #tpu.memory_space<vmem>>, vector<8x8x8xf32>
    %72 = vector.shape_cast %71 : vector<8x8x8xf32> to vector<64x8xf32>
    %c0_93 = arith.constant 0 : index
    %c48_94 = arith.constant 48 : index
    %73 = vector.load %arg12[%c0_93, %c48_94] : memref<64x72xf32, #tpu.memory_space<vmem>>, vector<64x8xf32>
    tpu.vector_store %arg12[%c0_93, %c48_94], %72 {strides = array<i32>} : memref<64x72xf32, #tpu.memory_space<vmem>>, vector<64x8xf32>,
    %c2_95 = arith.constant 2 : index
    %c1_96 = arith.constant 1 : index
    %c0_97 = arith.constant 0 : index
    %74 = vector.load %arg11[%c2_95, %c1_96, %c0_97] : memref<10x10x8xf32, #tpu.memory_space<vmem>>, vector<8x8x8xf32>
    %75 = vector.shape_cast %74 : vector<8x8x8xf32> to vector<64x8xf32>
    %c0_98 = arith.constant 0 : index
    %c56_99 = arith.constant 56 : index
    %76 = vector.load %arg12[%c0_98, %c56_99] : memref<64x72xf32, #tpu.memory_space<vmem>>, vector<64x8xf32>
    tpu.vector_store %arg12[%c0_98, %c56_99], %75 {strides = array<i32>} : memref<64x72xf32, #tpu.memory_space<vmem>>, vector<64x8xf32>,
    %c2_100 = arith.constant 2 : index
    %c2_101 = arith.constant 2 : index
    %c0_102 = arith.constant 0 : index
    %77 = vector.load %arg11[%c2_100, %c2_101, %c0_102] : memref<10x10x8xf32, #tpu.memory_space<vmem>>, vector<8x8x8xf32>
    %78 = vector.shape_cast %77 : vector<8x8x8xf32> to vector<64x8xf32>
    %c0_103 = arith.constant 0 : index
    %c64_104 = arith.constant 64 : index
    %79 = vector.load %arg12[%c0_103, %c64_104] : memref<64x72xf32, #tpu.memory_space<vmem>>, vector<64x8xf32>
    tpu.vector_store %arg12[%c0_103, %c64_104], %78 {strides = array<i32>} : memref<64x72xf32, #tpu.memory_space<vmem>>, vector<64x8xf32>,
    %c0_105 = arith.constant 0 : index
    %c0_106 = arith.constant 0 : index
    %80 = vector.load %arg12[%c0_105, %c0_106] : memref<64x72xf32, #tpu.memory_space<vmem>>, vector<64x72xf32>
    %c0_107 = arith.constant 0 : index
    %c0_108 = arith.constant 0 : index
    %81 = vector.load %arg6[%c0_107, %c0_108] : memref<72x8xf32, #tpu.memory_space<vmem>>, vector<72x8xf32>
    %cst_109 = arith.constant dense<0.000000e+00> : vector<64x8xf32>
    %82 = tpu.matmul %80, %81, %cst_109 {dimension_numbers = #tpu.dot_dimension_numbers<[1], [0], [0], [1], [0, 0, 1, 1], [], []>} : vector<64x72xf32>, vector<72x8xf32>, vector<64x8xf32> -> vector<64x8xf32>
    %c0_110 = arith.constant 0 : index
    %c0_111 = arith.constant 0 : index
    %83 = vector.load %arg7[%c0_110, %c0_111] : memref<1x8xf32, #tpu.memory_space<vmem>>, vector<1x8xf32>
    %84 = vector.broadcast %83 : vector<1x8xf32> to vector<64x8xf32>
    %85 = arith.addf %82, %84 : vector<64x8xf32>
    %cst_112 = arith.constant 0.000000e+00 : f32
    %86 = vector.broadcast %cst_112 : f32 to vector<64x8xf32>
    %87 = arith.maximumf %85, %86 : vector<64x8xf32>
    %88 = vector.shape_cast %87 : vector<64x8xf32> to vector<8x8x8xf32>
    %c1_113 = arith.constant 1 : index
    %c1_114 = arith.constant 1 : index
    %c0_115 = arith.constant 0 : index
    %89 = vector.load %arg11[%c1_113, %c1_114, %c0_115] : memref<10x10x8xf32, #tpu.memory_space<vmem>>, vector<8x8x8xf32>
    tpu.vector_store %arg11[%c1_113, %c1_114, %c0_115], %88 {strides = array<i32>} : memref<10x10x8xf32, #tpu.memory_space<vmem>>, vector<8x8x8xf32>,
    %c0_116 = arith.constant 0 : index
    %c0_117 = arith.constant 0 : index
    %c0_118 = arith.constant 0 : index
    %90 = vector.load %arg11[%c0_116, %c0_117, %c0_118] : memref<10x10x8xf32, #tpu.memory_space<vmem>>, vector<8x8x8xf32>
    %91 = vector.shape_cast %90 : vector<8x8x8xf32> to vector<64x8xf32>
    %c0_119 = arith.constant 0 : index
    %c0_120 = arith.constant 0 : index
    %92 = vector.load %arg12[%c0_119, %c0_120] : memref<64x72xf32, #tpu.memory_space<vmem>>, vector<64x8xf32>
    tpu.vector_store %arg12[%c0_119, %c0_120], %91 {strides = array<i32>} : memref<64x72xf32, #tpu.memory_space<vmem>>, vector<64x8xf32>,
    %c0_121 = arith.constant 0 : index
    %c1_122 = arith.constant 1 : index
    %c0_123 = arith.constant 0 : index
    %93 = vector.load %arg11[%c0_121, %c1_122, %c0_123] : memref<10x10x8xf32, #tpu.memory_space<vmem>>, vector<8x8x8xf32>
    %94 = vector.shape_cast %93 : vector<8x8x8xf32> to vector<64x8xf32>
    %c0_124 = arith.constant 0 : index
    %c8_125 = arith.constant 8 : index
    %95 = vector.load %arg12[%c0_124, %c8_125] : memref<64x72xf32, #tpu.memory_space<vmem>>, vector<64x8xf32>
    tpu.vector_store %arg12[%c0_124, %c8_125], %94 {strides = array<i32>} : memref<64x72xf32, #tpu.memory_space<vmem>>, vector<64x8xf32>,
    %c0_126 = arith.constant 0 : index
    %c2_127 = arith.constant 2 : index
    %c0_128 = arith.constant 0 : index
    %96 = vector.load %arg11[%c0_126, %c2_127, %c0_128] : memref<10x10x8xf32, #tpu.memory_space<vmem>>, vector<8x8x8xf32>
    %97 = vector.shape_cast %96 : vector<8x8x8xf32> to vector<64x8xf32>
    %c0_129 = arith.constant 0 : index
    %c16_130 = arith.constant 16 : index
    %98 = vector.load %arg12[%c0_129, %c16_130] : memref<64x72xf32, #tpu.memory_space<vmem>>, vector<64x8xf32>
    tpu.vector_store %arg12[%c0_129, %c16_130], %97 {strides = array<i32>} : memref<64x72xf32, #tpu.memory_space<vmem>>, vector<64x8xf32>,
    %c1_131 = arith.constant 1 : index
    %c0_132 = arith.constant 0 : index
    %c0_133 = arith.constant 0 : index
    %99 = vector.load %arg11[%c1_131, %c0_132, %c0_133] : memref<10x10x8xf32, #tpu.memory_space<vmem>>, vector<8x8x8xf32>
    %100 = vector.shape_cast %99 : vector<8x8x8xf32> to vector<64x8xf32>
    %c0_134 = arith.constant 0 : index
    %c24_135 = arith.constant 24 : index
    %101 = vector.load %arg12[%c0_134, %c24_135] : memref<64x72xf32, #tpu.memory_space<vmem>>, vector<64x8xf32>
    tpu.vector_store %arg12[%c0_134, %c24_135], %100 {strides = array<i32>} : memref<64x72xf32, #tpu.memory_space<vmem>>, vector<64x8xf32>,
    %c1_136 = arith.constant 1 : index
    %c1_137 = arith.constant 1 : index
    %c0_138 = arith.constant 0 : index
    %102 = vector.load %arg11[%c1_136, %c1_137, %c0_138] : memref<10x10x8xf32, #tpu.memory_space<vmem>>, vector<8x8x8xf32>
    %103 = vector.shape_cast %102 : vector<8x8x8xf32> to vector<64x8xf32>
    %c0_139 = arith.constant 0 : index
    %c32_140 = arith.constant 32 : index
    %104 = vector.load %arg12[%c0_139, %c32_140] : memref<64x72xf32, #tpu.memory_space<vmem>>, vector<64x8xf32>
    tpu.vector_store %arg12[%c0_139, %c32_140], %103 {strides = array<i32>} : memref<64x72xf32, #tpu.memory_space<vmem>>, vector<64x8xf32>,
    %c1_141 = arith.constant 1 : index
    %c2_142 = arith.constant 2 : index
    %c0_143 = arith.constant 0 : index
    %105 = vector.load %arg11[%c1_141, %c2_142, %c0_143] : memref<10x10x8xf32, #tpu.memory_space<vmem>>, vector<8x8x8xf32>
    %106 = vector.shape_cast %105 : vector<8x8x8xf32> to vector<64x8xf32>
    %c0_144 = arith.constant 0 : index
    %c40_145 = arith.constant 40 : index
    %107 = vector.load %arg12[%c0_144, %c40_145] : memref<64x72xf32, #tpu.memory_space<vmem>>, vector<64x8xf32>
    tpu.vector_store %arg12[%c0_144, %c40_145], %106 {strides = array<i32>} : memref<64x72xf32, #tpu.memory_space<vmem>>, vector<64x8xf32>,
    %c2_146 = arith.constant 2 : index
    %c0_147 = arith.constant 0 : index
    %c0_148 = arith.constant 0 : index
    %108 = vector.load %arg11[%c2_146, %c0_147, %c0_148] : memref<10x10x8xf32, #tpu.memory_space<vmem>>, vector<8x8x8xf32>
    %109 = vector.shape_cast %108 : vector<8x8x8xf32> to vector<64x8xf32>
    %c0_149 = arith.constant 0 : index
    %c48_150 = arith.constant 48 : index
    %110 = vector.load %arg12[%c0_149, %c48_150] : memref<64x72xf32, #tpu.memory_space<vmem>>, vector<64x8xf32>
    tpu.vector_store %arg12[%c0_149, %c48_150], %109 {strides = array<i32>} : memref<64x72xf32, #tpu.memory_space<vmem>>, vector<64x8xf32>,
    %c2_151 = arith.constant 2 : index
    %c1_152 = arith.constant 1 : index
    %c0_153 = arith.constant 0 : index
    %111 = vector.load %arg11[%c2_151, %c1_152, %c0_153] : memref<10x10x8xf32, #tpu.memory_space<vmem>>, vector<8x8x8xf32>
    %112 = vector.shape_cast %111 : vector<8x8x8xf32> to vector<64x8xf32>
    %c0_154 = arith.constant 0 : index
    %c56_155 = arith.constant 56 : index
    %113 = vector.load %arg12[%c0_154, %c56_155] : memref<64x72xf32, #tpu.memory_space<vmem>>, vector<64x8xf32>
    tpu.vector_store %arg12[%c0_154, %c56_155], %112 {strides = array<i32>} : memref<64x72xf32, #tpu.memory_space<vmem>>, vector<64x8xf32>,
    %c2_156 = arith.constant 2 : index
    %c2_157 = arith.constant 2 : index
    %c0_158 = arith.constant 0 : index
    %114 = vector.load %arg11[%c2_156, %c2_157, %c0_158] : memref<10x10x8xf32, #tpu.memory_space<vmem>>, vector<8x8x8xf32>
    %115 = vector.shape_cast %114 : vector<8x8x8xf32> to vector<64x8xf32>
    %c0_159 = arith.constant 0 : index
    %c64_160 = arith.constant 64 : index
    %116 = vector.load %arg12[%c0_159, %c64_160] : memref<64x72xf32, #tpu.memory_space<vmem>>, vector<64x8xf32>
    tpu.vector_store %arg12[%c0_159, %c64_160], %115 {strides = array<i32>} : memref<64x72xf32, #tpu.memory_space<vmem>>, vector<64x8xf32>,
    %c0_161 = arith.constant 0 : index
    %c0_162 = arith.constant 0 : index
    %117 = vector.load %arg12[%c0_161, %c0_162] : memref<64x72xf32, #tpu.memory_space<vmem>>, vector<64x72xf32>
    %c0_163 = arith.constant 0 : index
    %c0_164 = arith.constant 0 : index
    %118 = vector.load %arg8[%c0_163, %c0_164] : memref<72x8xf32, #tpu.memory_space<vmem>>, vector<72x8xf32>
    %cst_165 = arith.constant dense<0.000000e+00> : vector<64x8xf32>
    %119 = tpu.matmul %117, %118, %cst_165 {dimension_numbers = #tpu.dot_dimension_numbers<[1], [0], [0], [1], [0, 0, 1, 1], [], []>} : vector<64x72xf32>, vector<72x8xf32>, vector<64x8xf32> -> vector<64x8xf32>
    %c0_166 = arith.constant 0 : index
    %c0_167 = arith.constant 0 : index
    %120 = vector.load %arg9[%c0_166, %c0_167] : memref<1x8xf32, #tpu.memory_space<vmem>>, vector<1x8xf32>
    %121 = vector.broadcast %120 : vector<1x8xf32> to vector<64x8xf32>
    %122 = arith.addf %119, %121 : vector<64x8xf32>
    %cst_168 = arith.constant 2.000000e+00 : f32
    %123 = vector.broadcast %cst_168 : f32 to vector<64x8xf32>
    %124 = arith.mulf %123, %50 : vector<64x8xf32>
    %125 = arith.addf %124, %122 : vector<64x8xf32>
    %c0_169 = arith.constant 0 : index
    %c0_170 = arith.constant 0 : index
    %c0_171 = arith.constant 0 : index
    %126 = vector.load %arg10[%c0_169, %c0_170, %c0_171] : memref<1x64x8xf32, #tpu.memory_space<vmem>>, vector<1x64x8xf32>
    %127 = vector.shape_cast %126 : vector<1x64x8xf32> to vector<64x8xf32>
    %128 = vector.shape_cast %125 : vector<64x8xf32> to vector<1x64x8xf32>
    tpu.vector_store %arg10[%c0_169, %c0_170, %c0_171], %128 {strides = array<i32>} : memref<1x64x8xf32, #tpu.memory_space<vmem>>, vector<1x64x8xf32>,
    return
  }
  func.func @transform_0(%arg0: i32) -> (i32, i32, i32) {
    %c0_i32 = arith.constant 0 : i32
    %c0_i32_0 = arith.constant 0 : i32
    %c0_i32_1 = arith.constant 0 : i32
    return %arg0, %c0_i32, %c0_i32_0 : i32, i32, i32
  }
  func.func @transform_1(%arg0: i32) -> (i32, i32) {
    %c0_i32 = arith.constant 0 : i32
    %c0_i32_0 = arith.constant 0 : i32
    %c0_i32_1 = arith.constant 0 : i32
    return %c0_i32, %c0_i32_0 : i32, i32
  }
  func.func @transform_2(%arg0: i32) -> (i32, i32) {
    %c0_i32 = arith.constant 0 : i32
    %c0_i32_0 = arith.constant 0 : i32
    %c0_i32_1 = arith.constant 0 : i32
    return %c0_i32, %c0_i32_0 : i32, i32
  }
  func.func @transform_3(%arg0: i32) -> (i32, i32) {
    %c0_i32 = arith.constant 0 : i32
    %c0_i32_0 = arith.constant 0 : i32
    %c0_i32_1 = arith.constant 0 : i32
    return %c0_i32, %c0_i32_0 : i32, i32
  }
  func.func @transform_4(%arg0: i32) -> (i32, i32) {
    %c0_i32 = arith.constant 0 : i32
    %c0_i32_0 = arith.constant 0 : i32
    %c0_i32_1 = arith.constant 0 : i32
    return %c0_i32, %c0_i32_0 : i32, i32
  }
  func.func @transform_5(%arg0: i32) -> (i32, i32) {
    %c0_i32 = arith.constant 0 : i32
    %c0_i32_0 = arith.constant 0 : i32
    %c0_i32_1 = arith.constant 0 : i32
    return %c0_i32, %c0_i32_0 : i32, i32
  }
  func.func @transform_6(%arg0: i32) -> (i32, i32) {
    %c0_i32 = arith.constant 0 : i32
    %c0_i32_0 = arith.constant 0 : i32
    %c0_i32_1 = arith.constant 0 : i32
    return %c0_i32, %c0_i32_0 : i32, i32
  }
  func.func @transform_7(%arg0: i32) -> (i32, i32) {
    %c0_i32 = arith.constant 0 : i32
    %c0_i32_0 = arith.constant 0 : i32
    %c0_i32_1 = arith.constant 0 : i32
    return %c0_i32, %c0_i32_0 : i32, i32
  }
  func.func @transform_8(%arg0: i32) -> (i32, i32) {
    %c0_i32 = arith.constant 0 : i32
    %c0_i32_0 = arith.constant 0 : i32
    %c0_i32_1 = arith.constant 0 : i32
    return %c0_i32, %c0_i32_0 : i32, i32
  }
  func.func @transform_9(%arg0: i32) -> (i32, i32, i32) {
    %c0_i32 = arith.constant 0 : i32
    %c0_i32_0 = arith.constant 0 : i32
    %c0_i32_1 = arith.constant 0 : i32
    return %arg0, %c0_i32, %c0_i32_0 : i32, i32, i32
  }
}

</mosaic_0001>

<llo_original>
// kernel: tpu_custom_call.1
$region0: #{tpu_custom_call.1}
  #allocation0 [shape = 'u32[]', space=smem, size = 0x4, offset = 0x4, fixed_abs, tag = 'smem constant byte address 0x4 - core index']
  #allocation1 [shape = 'u32[144,128]{1,0:T(1,128)}', space=vmem, size = 0x12000, scoped, tag = 'internal scratch']
  #allocation2 [shape = 'f32[10,10,8]{2,1,0:T(8,128)}', space=vmem, size = 0x14000, scoped, tag = 'scratch operand']
  #allocation3 [shape = 'f32[64,72]{1,0:T(8,128)}', space=vmem, size = 0x8000, scoped, tag = 'scratch operand']
  %s0 = inlined_call_operand.vmem [shape: f32[2,64,36], index: 0, kind: input, shape index: {}]
  %s1 = inlined_call_operand.vmem [shape: f32[36,16], index: 1, kind: input, shape index: {}]
  %s2 = inlined_call_operand.vmem [shape: f32[1,16], index: 2, kind: input, shape index: {}]
  %s3 = inlined_call_operand.vmem [shape: f32[72,8], index: 3, kind: input, shape index: {}]
  %s4 = inlined_call_operand.vmem [shape: f32[1,8], index: 4, kind: input, shape index: {}]
  %s5 = inlined_call_operand.vmem [shape: f32[72,8], index: 5, kind: input, shape index: {}]
  %s6 = inlined_call_operand.vmem [shape: f32[1,8], index: 6, kind: input, shape index: {}]
  %s7 = inlined_call_operand.vmem [shape: f32[72,8], index: 7, kind: input, shape index: {}]
  %s8 = inlined_call_operand.vmem [shape: f32[1,8], index: 8, kind: input, shape index: {}]
  %s9 = inlined_call_operand.vmem [shape: f32[2,64,8], index: 9, kind: output, shape index: {}]
  %s10 = sld [smem:[#allocation0]]
  $region69: #{tpu_custom_call.1} parent=0
    _
  %s12 = ssub.s32 1, %s10
  %s13 = scalar_select 0, %s12, %s10
  loop: start=0, step=1, limit=4
  $region2: #{tpu_custom_call.1} parent=0 // loop_pre_header
    _
  $region3: #{tpu_custom_call.1} parent=0 // loop_header
    %s15 = sphi 0, %s19
    %p16 = scmp.ge.s32.totalorder %s15, 4
    %s25 = sphi 0, %s27
    %s28 = sphi 0, %s25
    %s29 = sphi 0, %s28
    %s45 = sphi 0, %s29
    %s49 = sphi 0, %s49
    %s51 = sphi 0, %s49
    %s52 = sphi 0, %s51
    %s66 = sphi 0, %s52
    %s70 = sphi 0, %s70
    %s72 = sphi 0, %s70
    %s73 = sphi 0, %s72
    %s87 = sphi 0, %s73
    %s91 = sphi 0, %s91
    %s93 = sphi 0, %s91
    %s94 = sphi 0, %s93
    %s108 = sphi 0, %s94
    %s112 = sphi 0, %s112
    %s114 = sphi 0, %s112
    %s115 = sphi 0, %s114
    %s129 = sphi 0, %s115
    %s133 = sphi 0, %s133
    %s135 = sphi 0, %s133
    %s136 = sphi 0, %s135
    %s150 = sphi 0, %s136
    %s154 = sphi 0, %s154
    %s156 = sphi 0, %s154
    %s157 = sphi 0, %s156
    %s171 = sphi 0, %s157
    %s175 = sphi 0, %s175
    %s177 = sphi 0, %s175
    %s178 = sphi 0, %s177
    %s192 = sphi 0, %s178
    %s196 = sphi 0, %s196
    %s198 = sphi 0, %s196
    %s199 = sphi 0, %s198
    %s213 = sphi 0, %s199
    %s219 = sphi 0, %s221
    %s222 = sphi 0, %s219
    %s223 = sphi 0, %s222
    %s239 = sphi 0, %s223
  $region4: #{tpu_custom_call.1} parent=0 // loop_header_branch
    %18 = sbr.rel (%p16) target = $region8
  $region5: #{tpu_custom_call.1} parent=0 // loop_body
    %s20 = ssub.s32 %s15, 1
    %s21 = ssub.s32 %s15, 2
    %s22 = sadd.s32 %s15, 1
    %s23 = ssub.s32 %s15, %s22
    %p24 = scmp.eq.s32.totalorder %s23, 0
    %s26 = sadd.s32 %s25, 1
    %s27 = scalar_select %p24, %s25, %s26
    %p30 = pneg %p24
    %p31 = scmp.eq.s32.totalorder %s15, 1
    %p32 = por %p30, %p31
    %p33 = scmp.ne.s32.totalorder %s25, %s28
    %p34 = scmp.eq.s32.totalorder %s15, 0
    %p35 = por %p33, %p34
    %p36 = scmp.ne.s32.totalorder %s25, %s28
    %p37 = scmp.eq.s32.totalorder %s20, 1
    %p38 = por %p36, %p37
    %p39 = scmp.ne.s32.totalorder %s28, %s29
    %p40 = scmp.eq.s32.totalorder %s20, 0
    %p41 = por %p39, %p40
    %p42 = scmp.ne.s32.totalorder %s28, %s29
    %p43 = scmp.eq.s32.totalorder %s21, 1
    %p44 = por %p42, %p43
    %p46 = scmp.ne.s32.totalorder %s29, %s45
    %p47 = scmp.eq.s32.totalorder %s21, 0
    %p48 = por %p46, %p47
    %s50 = sadd.s32 %s49, 1
    %p53 = scmp.eq.s32.totalorder %s15, 1
    %p54 = scmp.ne.s32.totalorder %s49, %s51
    %p55 = scmp.eq.s32.totalorder %s15, 0
    %p56 = por %p54, %p55
    %p57 = scmp.ne.s32.totalorder %s49, %s51
    %p58 = scmp.eq.s32.totalorder %s20, 1
    %p59 = por %p57, %p58
    %p60 = scmp.ne.s32.totalorder %s51, %s52
    %p61 = scmp.eq.s32.totalorder %s20, 0
    %p62 = por %p60, %p61
    %p63 = scmp.ne.s32.totalorder %s51, %s52
    %p64 = scmp.eq.s32.totalorder %s21, 1
    %p65 = por %p63, %p64
    %p67 = scmp.ne.s32.totalorder %s52, %s66
    %p68 = scmp.eq.s32.totalorder %s21, 0
    %p69 = por %p67, %p68
    %s71 = sadd.s32 %s70, 1
    %p74 = scmp.eq.s32.totalorder %s15, 1
    %p75 = scmp.ne.s32.totalorder %s70, %s72
    %p76 = scmp.eq.s32.totalorder %s15, 0
    %p77 = por %p75, %p76
    %p78 = scmp.ne.s32.totalorder %s70, %s72
    %p79 = scmp.eq.s32.totalorder %s20, 1
    %p80 = por %p78, %p79
    %p81 = scmp.ne.s32.totalorder %s72, %s73
    %p82 = scmp.eq.s32.totalorder %s20, 0
    %p83 = por %p81, %p82
    %p84 = scmp.ne.s32.totalorder %s72, %s73
    %p85 = scmp.eq.s32.totalorder %s21, 1
    %p86 = por %p84, %p85
    %p88 = scmp.ne.s32.totalorder %s73, %s87
    %p89 = scmp.eq.s32.totalorder %s21, 0
    %p90 = por %p88, %p89
    %s92 = sadd.s32 %s91, 1
    %p95 = scmp.eq.s32.totalorder %s15, 1
    %p96 = scmp.ne.s32.totalorder %s91, %s93
    %p97 = scmp.eq.s32.totalorder %s15, 0
    %p98 = por %p96, %p97
    %p99 = scmp.ne.s32.totalorder %s91, %s93
    %p100 = scmp.eq.s32.totalorder %s20, 1
    %p101 = por %p99, %p100
    %p102 = scmp.ne.s32.totalorder %s93, %s94
    %p103 = scmp.eq.s32.totalorder %s20, 0
    %p104 = por %p102, %p103
    %p105 = scmp.ne.s32.totalorder %s93, %s94
    %p106 = scmp.eq.s32.totalorder %s21, 1
    %p107 = por %p105, %p106
    %p109 = scmp.ne.s32.totalorder %s94, %s108
    %p110 = scmp.eq.s32.totalorder %s21, 0
    %p111 = por %p109, %p110
    %s113 = sadd.s32 %s112, 1
    %p116 = scmp.eq.s32.totalorder %s15, 1
    %p117 = scmp.ne.s32.totalorder %s112, %s114
    %p118 = scmp.eq.s32.totalorder %s15, 0
    %p119 = por %p117, %p118
    %p120 = scmp.ne.s32.totalorder %s112, %s114
    %p121 = scmp.eq.s32.totalorder %s20, 1
    %p122 = por %p120, %p121
    %p123 = scmp.ne.s32.totalorder %s114, %s115
    %p124 = scmp.eq.s32.totalorder %s20, 0
    %p125 = por %p123, %p124
    %p126 = scmp.ne.s32.totalorder %s114, %s115
    %p127 = scmp.eq.s32.totalorder %s21, 1
    %p128 = por %p126, %p127
    %p130 = scmp.ne.s32.totalorder %s115, %s129
    %p131 = scmp.eq.s32.totalorder %s21, 0
    %p132 = por %p130, %p131
    %s134 = sadd.s32 %s133, 1
    %p137 = scmp.eq.s32.totalorder %s15, 1
    %p138 = scmp.ne.s32.totalorder %s133, %s135
    %p139 = scmp.eq.s32.totalorder %s15, 0
    %p140 = por %p138, %p139
    %p141 = scmp.ne.s32.totalorder %s133, %s135
    %p142 = scmp.eq.s32.totalorder %s20, 1
    %p143 = por %p141, %p142
    %p144 = scmp.ne.s32.totalorder %s135, %s136
    %p145 = scmp.eq.s32.totalorder %s20, 0
    %p146 = por %p144, %p145
    %p147 = scmp.ne.s32.totalorder %s135, %s136
    %p148 = scmp.eq.s32.totalorder %s21, 1
    %p149 = por %p147, %p148
    %p151 = scmp.ne.s32.totalorder %s136, %s150
    %p152 = scmp.eq.s32.totalorder %s21, 0
    %p153 = por %p151, %p152
    %s155 = sadd.s32 %s154, 1
    %p158 = scmp.eq.s32.totalorder %s15, 1
    %p159 = scmp.ne.s32.totalorder %s154, %s156
    %p160 = scmp.eq.s32.totalorder %s15, 0
    %p161 = por %p159, %p160
    %p162 = scmp.ne.s32.totalorder %s154, %s156
    %p163 = scmp.eq.s32.totalorder %s20, 1
    %p164 = por %p162, %p163
    %p165 = scmp.ne.s32.totalorder %s156, %s157
    %p166 = scmp.eq.s32.totalorder %s20, 0
    %p167 = por %p165, %p166
    %p168 = scmp.ne.s32.totalorder %s156, %s157
    %p169 = scmp.eq.s32.totalorder %s21, 1
    %p170 = por %p168, %p169
    %p172 = scmp.ne.s32.totalorder %s157, %s171
    %p173 = scmp.eq.s32.totalorder %s21, 0
    %p174 = por %p172, %p173
    %s176 = sadd.s32 %s175, 1
    %p179 = scmp.eq.s32.totalorder %s15, 1
    %p180 = scmp.ne.s32.totalorder %s175, %s177
    %p181 = scmp.eq.s32.totalorder %s15, 0
    %p182 = por %p180, %p181
    %p183 = scmp.ne.s32.totalorder %s175, %s177
    %p184 = scmp.eq.s32.totalorder %s20, 1
    %p185 = por %p183, %p184
    %p186 = scmp.ne.s32.totalorder %s177, %s178
    %p187 = scmp.eq.s32.totalorder %s20, 0
    %p188 = por %p186, %p187
    %p189 = scmp.ne.s32.totalorder %s177, %s178
    %p190 = scmp.eq.s32.totalorder %s21, 1
    %p191 = por %p189, %p190
    %p193 = scmp.ne.s32.totalorder %s178, %s192
    %p194 = scmp.eq.s32.totalorder %s21, 0
    %p195 = por %p193, %p194
    %s197 = sadd.s32 %s196, 1
    %p200 = scmp.eq.s32.totalorder %s15, 1
    %p201 = scmp.ne.s32.totalorder %s196, %s198
    %p202 = scmp.eq.s32.totalorder %s15, 0
    %p203 = por %p201, %p202
    %p204 = scmp.ne.s32.totalorder %s196, %s198
    %p205 = scmp.eq.s32.totalorder %s20, 1
    %p206 = por %p204, %p205
    %p207 = scmp.ne.s32.totalorder %s198, %s199
    %p208 = scmp.eq.s32.totalorder %s20, 0
    %p209 = por %p207, %p208
    %p210 = scmp.ne.s32.totalorder %s198, %s199
    %p211 = scmp.eq.s32.totalorder %s21, 1
    %p212 = por %p210, %p211
    %p214 = scmp.ne.s32.totalorder %s199, %s213
    %p215 = scmp.eq.s32.totalorder %s21, 0
    %p216 = por %p214, %p215
    %s217 = ssub.s32 %s15, %s22
    %p218 = scmp.eq.s32.totalorder %s217, 0
    %s220 = sadd.s32 %s219, 1
    %s221 = scalar_select %p218, %s219, %s220
    %p224 = pneg %p218
    %p225 = scmp.eq.s32.totalorder %s15, 1
    %p226 = por %p224, %p225
    %p227 = scmp.ne.s32.totalorder %s219, %s222
    %p228 = scmp.eq.s32.totalorder %s15, 0
    %p229 = por %p227, %p228
    %p230 = scmp.ne.s32.totalorder %s219, %s222
    %p231 = scmp.eq.s32.totalorder %s20, 1
    %p232 = por %p230, %p231
    %p233 = scmp.ne.s32.totalorder %s222, %s223
    %p234 = scmp.eq.s32.totalorder %s20, 0
    %p235 = por %p233, %p234
    %p236 = scmp.ne.s32.totalorder %s222, %s223
    %p237 = scmp.eq.s32.totalorder %s21, 1
    %p238 = por %p236, %p237
    %p240 = scmp.ne.s32.totalorder %s223, %s239
    %p241 = scmp.eq.s32.totalorder %s21, 0
    %p242 = por %p240, %p241
    %p243 = scmp.le.s32.totalorder 1, %s15
    %p244 = scmp.lt.s32.totalorder %s15, 3
    %p245 = pnand %p243, %p244
    %p246 = pneg %p245
    // Predicated region
    $region9: #{tpu_custom_call.1} parent=5 // pred_check
      _
    $region10: #{tpu_custom_call.1} parent=5 // pred_check_branch
      %248 = sbr.rel (%p245) target = $region12
    $region11: #{tpu_custom_call.1} parent=5 // pred_region
      %s249 = ssub.s32 %s15, 1
      // Predicated region
      $region13: #{tpu_custom_call.1} parent=11 // pred_check
        %p250 = pneg %p62
      $region14: #{tpu_custom_call.1} parent=11 // pred_check_branch
        %252 = sbr.rel (%p250) target = $region16
      $region15: #{tpu_custom_call.1} parent=11 // pred_region
        _
      $region16: #{tpu_custom_call.1} parent=11 // pred_fallthru
        _
      // Predicated region
      $region17: #{tpu_custom_call.1} parent=11 // pred_check
        %p253 = pneg %p83
      $region18: #{tpu_custom_call.1} parent=11 // pred_check_branch
        %255 = sbr.rel (%p253) target = $region20
      $region19: #{tpu_custom_call.1} parent=11 // pred_region
        _
      $region20: #{tpu_custom_call.1} parent=11 // pred_fallthru
        _
      // Predicated region
      $region21: #{tpu_custom_call.1} parent=11 // pred_check
        %p256 = pneg %p104
      $region22: #{tpu_custom_call.1} parent=11 // pred_check_branch
        %258 = sbr.rel (%p256) target = $region24
      $region23: #{tpu_custom_call.1} parent=11 // pred_region
        _
      $region24: #{tpu_custom_call.1} parent=11 // pred_fallthru
        _
      // Predicated region
      $region25: #{tpu_custom_call.1} parent=11 // pred_check
        %p259 = pneg %p125
      $region26: #{tpu_custom_call.1} parent=11 // pred_check_branch
        %261 = sbr.rel (%p259) target = $region28
      $region27: #{tpu_custom_call.1} parent=11 // pred_region
        _
      $region28: #{tpu_custom_call.1} parent=11 // pred_fallthru
        _
      // Predicated region
      $region29: #{tpu_custom_call.1} parent=11 // pred_check
        %p262 = pneg %p146
      $region30: #{tpu_custom_call.1} parent=11 // pred_check_branch
        %264 = sbr.rel (%p262) target = $region32
      $region31: #{tpu_custom_call.1} parent=11 // pred_region
        _
      $region32: #{tpu_custom_call.1} parent=11 // pred_fallthru
        _
      // Predicated region
      $region33: #{tpu_custom_call.1} parent=11 // pred_check
        %p265 = pneg %p167
      $region34: #{tpu_custom_call.1} parent=11 // pred_check_branch
        %267 = sbr.rel (%p265) target = $region36
      $region35: #{tpu_custom_call.1} parent=11 // pred_region
        _
      $region36: #{tpu_custom_call.1} parent=11 // pred_fallthru
        _
      // Predicated region
      $region37: #{tpu_custom_call.1} parent=11 // pred_check
        %p268 = pneg %p188
      $region38: #{tpu_custom_call.1} parent=11 // pred_check_branch
        %270 = sbr.rel (%p268) target = $region40
      $region39: #{tpu_custom_call.1} parent=11 // pred_region
        _
      $region40: #{tpu_custom_call.1} parent=11 // pred_fallthru
        _
      // Predicated region
      $region41: #{tpu_custom_call.1} parent=11 // pred_check
        %p271 = pneg %p209
      $region42: #{tpu_custom_call.1} parent=11 // pred_check_branch
        %273 = sbr.rel (%p271) target = $region44
      $region43: #{tpu_custom_call.1} parent=11 // pred_region
        _
      $region44: #{tpu_custom_call.1} parent=11 // pred_fallthru
        _
    $region12: #{tpu_custom_call.1} parent=5 // pred_fallthru
      _
    %p274 = scmp.lt.s32.totalorder %s15, 2
    // Predicated region
    $region45: #{tpu_custom_call.1} parent=5 // pred_check
      %p275 = pneg %p274
    $region46: #{tpu_custom_call.1} parent=5 // pred_check_branch
      %277 = sbr.rel (%p275) target = $region48
    $region47: #{tpu_custom_call.1} parent=5 // pred_region
      // Predicated region
      $region49: #{tpu_custom_call.1} parent=47 // pred_check
        %p278 = pneg %p35
      $region50: #{tpu_custom_call.1} parent=47 // pred_check_branch
        %280 = sbr.rel (%p278) target = $region52
      $region51: #{tpu_custom_call.1} parent=47 // pred_region
        %p281 = scmp.lt.s32.totalorder %s15, 1
        %s282 = scalar_select %p281, %s15, 1
        %s283 = smul.addr %s282, 8
        %s284 = smul.addr %s283, 8
        %s285 = scalar_lea.vmem %s0, %s284
      $region52: #{tpu_custom_call.1} parent=47 // pred_fallthru
        _
    $region48: #{tpu_custom_call.1} parent=5 // pred_fallthru
      _
    %p286 = scmp.le.s32.totalorder 1, %s15
    %p287 = scmp.lt.s32.totalorder %s15, 3
    %p288 = pnand %p286, %p287
    %p289 = pneg %p288
    // Predicated region
    $region53: #{tpu_custom_call.1} parent=5 // pred_check
      _
    $region54: #{tpu_custom_call.1} parent=5 // pred_check_branch
      %291 = sbr.rel (%p288) target = $region56
    $region55: #{tpu_custom_call.1} parent=5 // pred_region
      %s292 = ssub.s32 %s15, 1
      %p293 = scmp.lt.s32.totalorder %s20, 1
      %s294 = scalar_select %p293, %s20, 1
      %s295 = smul.addr %s294, 8
      %s296 = smul.addr %s295, 8
      %s297 = scalar_lea.vmem %s0, %s296
      %p298 = pneg %p41
      %p299 = pneg %p38
      %p300 = pneg %p62
      %p301 = pneg %p59
      %p302 = pneg %p83
      %p303 = pneg %p80
      %p304 = pneg %p104
      %p305 = pneg %p101
      %p306 = pneg %p125
      %p307 = pneg %p122
      %p308 = pneg %p146
      %p309 = pneg %p143
      %p310 = pneg %p167
      %p311 = pneg %p164
      %p312 = pneg %p188
      %p313 = pneg %p185
      %p314 = pneg %p209
      %p315 = pneg %p206
      %p316 = pneg %p235
      %p317 = pneg %p232
      %p318 = scmp.lt.s32.totalorder %s20, 1
      %s319 = scalar_select %p318, %s20, 1
      %s320 = smul.addr %s319, 8
      %s321 = smul.addr %s320, 8
      %s322 = scalar_lea.vmem %s9, %s321
      %p323 = scmp.lt.s32.totalorder %s20, 1
      %s324 = scalar_select %p323, %s20, 1
      %s325 = smul.addr %s324, 8
      %s326 = smul.addr %s325, 8
      %s327 = scalar_lea.vmem %s0, %s326
      %p328 = scmp.lt.s32.totalorder %s20, 1
      %s329 = scalar_select %p328, %s20, 1
      %s330 = smul.addr %s329, 8
      %s331 = smul.addr %s330, 8
      %s332 = scalar_lea.vmem %s9, %s331
      %vm333 = vcmask 64512
      %334 = vst.msk [vmem:[#allocation2] sm:$0xff] %vm333, 0.0
      %vm335 = vcmask 58368
      %336 = vst.msk [vmem:[#allocation2 + $0x8] sm:$0x3] %vm335, 0.0
      %337 = vst.msk [vmem:[#allocation2 + $0x10] sm:$0xff] %vm333, 0.0
      %338 = vst.msk [vmem:[#allocation2 + $0x18] sm:$0x3] %vm335, 0.0
      %339 = vst.msk [vmem:[#allocation2 + $0x20] sm:$0xff] %vm333, 0.0
      %340 = vst.msk [vmem:[#allocation2 + $0x28] sm:$0x3] %vm335, 0.0
      %341 = vst.msk [vmem:[#allocation2 + $0x30] sm:$0xff] %vm333, 0.0
      %342 = vst.msk [vmem:[#allocation2 + $0x38] sm:$0x3] %vm335, 0.0
      %343 = vst.msk [vmem:[#allocation2 + $0x40] sm:$0xff] %vm333, 0.0
      %344 = vst.msk [vmem:[#allocation2 + $0x48] sm:$0x3] %vm335, 0.0
      %345 = vst.msk [vmem:[#allocation2 + $0x50] sm:$0xff] %vm333, 0.0
      %346 = vst.msk [vmem:[#allocation2 + $0x58] sm:$0x3] %vm335, 0.0
      %347 = vst.msk [vmem:[#allocation2 + $0x60] sm:$0xff] %vm333, 0.0
      %348 = vst.msk [vmem:[#allocation2 + $0x68] sm:$0x3] %vm335, 0.0
      %349 = vst.msk [vmem:[#allocation2 + $0x70] sm:$0xff] %vm333, 0.0
      %350 = vst.msk [vmem:[#allocation2 + $0x78] sm:$0x3] %vm335, 0.0
      %351 = vst.msk [vmem:[#allocation2 + $0x80] sm:$0xff] %vm333, 0.0
      %352 = vst.msk [vmem:[#allocation2 + $0x88] sm:$0x3] %vm335, 0.0
      %353 = vst.msk [vmem:[#allocation2 + $0x90] sm:$0xff] %vm333, 0.0
      %354 = vst.msk [vmem:[#allocation2 + $0x98] sm:$0x3] %vm335, 0.0
      %v355 = vld [vmem:[%s327] sm:$0xff]
      %v356 = vld [vmem:[%s327 + $0x8] sm:$0xff]
      %v357 = vld [vmem:[%s327 + $0x10] sm:$0xff]
      %v358 = vld [vmem:[%s327 + $0x18] sm:$0xff]
      %v359 = vld [vmem:[%s327 + $0x20] sm:$0xff]
      %v360 = vld [vmem:[%s327 + $0x28] sm:$0xff]
      %v361 = vld [vmem:[%s327 + $0x30] sm:$0xff]
      %v362 = vld [vmem:[%s327 + $0x38] sm:$0xff]
      %v363 = vld [vmem:[%s1] sm:$0xff]
      %v364 = vld [vmem:[%s1 + $0x8] sm:$0xff]
      %v365 = vld [vmem:[%s1 + $0x10] sm:$0xff]
      %v366 = vld [vmem:[%s1 + $0x18] sm:$0xff]
      %v367 = vld [vmem:[%s1 + $0x20] sm:$0xf]
      %v368 = vld [vmem:[%s2] sm:$0x1]
      %v370 = vlaneseq
      %v371 = vshrl.u32 %v370, 7
      %v372 = vsub.s32 0, %v371
      %v373 = vrot.slane %v368, %v372
      %vm375 = vcmask 293888
      %v377 = vsel %vm375, %v355, 0
      %v380 = vsel %vm375, %v356, 0
      %v383 = vsel %vm375, %v357, 0
      %v386 = vsel %vm375, %v358, 0
      %v389 = vsel %vm375, %v359, 0
      %v392 = vsel %vm375, %v360, 0
      %v395 = vsel %vm375, %v361, 0
      %v398 = vsel %vm375, %v362, 0
      %vm400 = vcmask 1043456
      %v402 = vsel %vm400, %v367, 0
      %404 = vmatprep.subr.mxu0 0.0
      %405 = vmatpush1.msra.mxu0 %v363
      %406 = vmatprep.subr.mxu0 0.0
      %407 = vmatpush1.msra.mxu0 %v364
      %408 = vmatprep.subr.mxu0 0.0
      %409 = vmatpush1.msra.mxu0 %v365
      %410 = vmatprep.subr.mxu0 0.0
      %411 = vmatpush1.msra.mxu0 %v366
      %412 = vmatprep.subr.mxu0 0.0
      %413 = vmatpush1.msra.mxu0 %v402
      %414 = vmatprep.subr.mxu0 0.0
      %415 = vmatpush1.msra.mxu0 0.0
      %416 = vmatprep.subr.mxu0 0.0
      %417 = vmatpush1.msra.mxu0 0.0
      %418 = vmatprep.subr.mxu0 0.0
      %419 = vmatpush1.msra.mxu0 0.0
      %420 = vmatprep.subr.mxu0 0.0
      %421 = vmatpush1.msra.mxu0 0.0
      %422 = vmatprep.subr.mxu0 0.0
      %423 = vmatpush1.msra.mxu0 0.0
      %424 = vmatprep.subr.mxu0 0.0
      %425 = vmatpush1.msra.mxu0 0.0
      %426 = vmatprep.subr.mxu0 0.0
      %427 = vmatpush1.msra.mxu0 0.0
      %428 = vmatprep.subr.mxu0 0.0
      %429 = vmatpush1.msra.mxu0 0.0
      %430 = vmatprep.subr.mxu0 0.0
      %431 = vmatpush1.msra.mxu0 0.0
      %432 = vmatprep.subr.mxu0 0.0
      %433 = vmatpush1.msra.mxu0 0.0
      %434 = vmatprep.subr.mxu0 0.0
      %435 = vmatpush1.msra.mxu0 0.0
      %436 = vmatprep.subr.mxu0 0.0
      %437 = vmatpush1.msra.mxu0 0.0
      %438 = vmatprep.subr.mxu0 0.0
      %439 = vmatpush1.msra.mxu0 0.0
      %440 = vmatprep.subr.mxu0 0.0
      %441 = vmatpush1.msra.mxu0 0.0
      %442 = vmatprep.subr.mxu0 0.0
      %443 = vmatpush1.msra.mxu0 0.0
      %444 = vmatprep.subr.mxu0 0.0
      %445 = vmatpush1.msra.mxu0 0.0
      %446 = vmatprep.subr.mxu0 0.0
      %447 = vmatpush1.msra.mxu0 0.0
      %448 = vmatprep.subr.mxu0 0.0
      %449 = vmatpush1.msra.mxu0 0.0
      %450 = vmatprep.subr.mxu0 0.0
      %451 = vmatpush1.msra.mxu0 0.0
      %452 = vmatprep.subr.mxu0 0.0
      %453 = vmatpush1.msra.mxu0 0.0
      %454 = vmatprep.subr.mxu0 0.0
      %455 = vmatpush1.msra.mxu0 0.0
      %456 = vmatprep.subr.mxu0 0.0
      %457 = vmatpush1.msra.mxu0 0.0
      %458 = vmatprep.subr.mxu0 0.0
      %459 = vmatpush1.msra.mxu0 0.0
      %460 = vmatprep.subr.mxu0 0.0
      %461 = vmatpush1.msra.mxu0 0.0
      %462 = vmatprep.subr.mxu0 0.0
      %463 = vmatpush1.msra.mxu0 0.0
      %464 = vmatprep.subr.mxu0 0.0
      %465 = vmatpush1.msra.mxu0 0.0
      %466 = vmatprep.subr.mxu0 0.0
      %467 = vmatpush1.msra.mxu0 0.0
      %468 = vmatprep.mubr.f32.mxu0 0.0
      %469 = vmatmul.mubr.f32.gmra.mrb[0].mxu0 %v377
      %v470 = vpop.f32.mrb[0].mxu0
      %v471 = vadd.f32 %v373, %v470
      %v472 = vpop.f32.mrb[0].mxu0
      %473 = vmatprep.mubr.f32.mxu0 0.0
      %474 = vmatmul.mubr.f32.gmra.mrb[0].mxu0 %v380
      %v475 = vpop.f32.mrb[0].mxu0
      %v476 = vadd.f32 %v373, %v475
      %v477 = vpop.f32.mrb[0].mxu0
      %478 = vmatprep.mubr.f32.mxu0 0.0
      %479 = vmatmul.mubr.f32.gmra.mrb[0].mxu0 %v383
      %v480 = vpop.f32.mrb[0].mxu0
      %v481 = vadd.f32 %v373, %v480
      %v482 = vpop.f32.mrb[0].mxu0
      %483 = vmatprep.mubr.f32.mxu0 0.0
      %484 = vmatmul.mubr.f32.gmra.mrb[0].mxu0 %v386
      %v485 = vpop.f32.mrb[0].mxu0
      %v486 = vadd.f32 %v373, %v485
      %v487 = vpop.f32.mrb[0].mxu0
      %488 = vmatprep.mubr.f32.mxu0 0.0
      %489 = vmatmul.mubr.f32.gmra.mrb[0].mxu0 %v389
      %v490 = vpop.f32.mrb[0].mxu0
      %v491 = vadd.f32 %v373, %v490
      %v492 = vpop.f32.mrb[0].mxu0
      %493 = vmatprep.mubr.f32.mxu0 0.0
      %494 = vmatmul.mubr.f32.gmra.mrb[0].mxu0 %v392
      %v495 = vpop.f32.mrb[0].mxu0
      %v496 = vadd.f32 %v373, %v495
      %v497 = vpop.f32.mrb[0].mxu0
      %498 = vmatprep.mubr.f32.mxu0 0.0
      %499 = vmatmul.mubr.f32.gmra.mrb[0].mxu0 %v395
      %v500 = vpop.f32.mrb[0].mxu0
      %v501 = vadd.f32 %v373, %v500
      %v502 = vpop.f32.mrb[0].mxu0
      %503 = vmatprep.mubr.f32.mxu0 0.0
      %504 = vmatmul.mubr.f32.gmra.mrb[0].mxu0 %v398
      %v505 = vpop.f32.mrb[0].mxu0
      %v506 = vadd.f32 %v373, %v505
      %v507 = vpop.f32.mrb[0].mxu0
      %508 = vdwg.mxu0
      %v509 = vmax.f32 %v471, 0.0
      %v510 = vmax.f32 %v476, 0.0
      %v511 = vmax.f32 %v481, 0.0
      %v512 = vmax.f32 %v486, 0.0
      %v513 = vmax.f32 %v491, 0.0
      %v514 = vmax.f32 %v496, 0.0
      %v515 = vmax.f32 %v501, 0.0
      %v516 = vmax.f32 %v506, 0.0
      %s517 = scalar_lea.vmem [#allocation2], 16
      %518 = vst.msk [vmem:[%s517 + $0x1] sm:$0xff] %vm333, %v509
      %519 = vst.msk [vmem:[%s517 + $0x11] sm:$0xff] %vm333, %v510
      %520 = vst.msk [vmem:[%s517 + $0x21] sm:$0xff] %vm333, %v511
      %521 = vst.msk [vmem:[%s517 + $0x31] sm:$0xff] %vm333, %v512
      %522 = vst.msk [vmem:[%s517 + $0x41] sm:$0xff] %vm333, %v513
      %523 = vst.msk [vmem:[%s517 + $0x51] sm:$0xff] %vm333, %v514
      %524 = vst.msk [vmem:[%s517 + $0x61] sm:$0xff] %vm333, %v515
      %525 = vst.msk [vmem:[%s517 + $0x71] sm:$0xff] %vm333, %v516
      %v526 = vld [vmem:[#allocation2] sm:$0xff]
      %v527 = vld [vmem:[#allocation2 + $0x10] sm:$0xff]
      %v528 = vld [vmem:[#allocation2 + $0x20] sm:$0xff]
      %v529 = vld [vmem:[#allocation2 + $0x30] sm:$0xff]
      %v530 = vld [vmem:[#allocation2 + $0x40] sm:$0xff]
      %v531 = vld [vmem:[#allocation2 + $0x50] sm:$0xff]
      %v532 = vld [vmem:[#allocation2 + $0x60] sm:$0xff]
      %v533 = vld [vmem:[#allocation2 + $0x70] sm:$0xff]
      %534 = vst.msk [vmem:[#allocation3] sm:$0xff] %vm333, %v526
      %535 = vst.msk [vmem:[#allocation3 + $0x8] sm:$0xff] %vm333, %v527
      %536 = vst.msk [vmem:[#allocation3 + $0x10] sm:$0xff] %vm333, %v528
      %537 = vst.msk [vmem:[#allocation3 + $0x18] sm:$0xff] %vm333, %v529
      %538 = vst.msk [vmem:[#allocation3 + $0x20] sm:$0xff] %vm333, %v530
      %539 = vst.msk [vmem:[#allocation3 + $0x28] sm:$0xff] %vm333, %v531
      %540 = vst.msk [vmem:[#allocation3 + $0x30] sm:$0xff] %vm333, %v532
      %541 = vst.msk [vmem:[#allocation3 + $0x38] sm:$0xff] %vm333, %v533
      %v542 = vld [vmem:[#allocation2 + $0x1] sm:$0xff]
      %v543 = vld [vmem:[#allocation2 + $0x11] sm:$0xff]
      %v544 = vld [vmem:[#allocation2 + $0x21] sm:$0xff]
      %v545 = vld [vmem:[#allocation2 + $0x31] sm:$0xff]
      %v546 = vld [vmem:[#allocation2 + $0x41] sm:$0xff]
      %v547 = vld [vmem:[#allocation2 + $0x51] sm:$0xff]
      %v548 = vld [vmem:[#allocation2 + $0x61] sm:$0xff]
      %v549 = vld [vmem:[#allocation2 + $0x71] sm:$0xff]
      %558 = vrot.lane.b32.xlu0 %v542, 8
      %v559 = vpop.permute.xlu0 %558
      %560 = vrot.lane.b32.xlu0 %v543, 8
      %v561 = vpop.permute.xlu0 %560
      %562 = vrot.lane.b32.xlu0 %v544, 8
      %v563 = vpop.permute.xlu0 %562
      %564 = vrot.lane.b32.xlu0 %v545, 8
      %v565 = vpop.permute.xlu0 %564
      %566 = vrot.lane.b32.xlu0 %v546, 8
      %v567 = vpop.permute.xlu0 %566
      %568 = vrot.lane.b32.xlu0 %v547, 8
      %v569 = vpop.permute.xlu0 %568
      %570 = vrot.lane.b32.xlu0 %v548, 8
      %v571 = vpop.permute.xlu0 %570
      %572 = vrot.lane.b32.xlu0 %v549, 8
      %v573 = vpop.permute.xlu0 %572
      %vm582 = vcmask 130112
      %583 = vst.msk [vmem:[#allocation3] sm:$0xff] %vm582, %v559
      %584 = vst.msk [vmem:[#allocation3 + $0x8] sm:$0xff] %vm582, %v561
      %585 = vst.msk [vmem:[#allocation3 + $0x10] sm:$0xff] %vm582, %v563
      %586 = vst.msk [vmem:[#allocation3 + $0x18] sm:$0xff] %vm582, %v565
      %587 = vst.msk [vmem:[#allocation3 + $0x20] sm:$0xff] %vm582, %v567
      %588 = vst.msk [vmem:[#allocation3 + $0x28] sm:$0xff] %vm582, %v569
      %589 = vst.msk [vmem:[#allocation3 + $0x30] sm:$0xff] %vm582, %v571
      %590 = vst.msk [vmem:[#allocation3 + $0x38] sm:$0xff] %vm582, %v573
      %v591 = vld [vmem:[#allocation2 + $0x2] sm:$0xff]
      %v592 = vld [vmem:[#allocation2 + $0x12] sm:$0xff]
      %v593 = vld [vmem:[#allocation2 + $0x22] sm:$0xff]
      %v594 = vld [vmem:[#allocation2 + $0x32] sm:$0xff]
      %v595 = vld [vmem:[#allocation2 + $0x42] sm:$0xff]
      %v596 = vld [vmem:[#allocation2 + $0x52] sm:$0xff]
      %v597 = vld [vmem:[#allocation2 + $0x62] sm:$0xff]
      %v598 = vld [vmem:[#allocation2 + $0x72] sm:$0xff]
      %607 = vrot.lane.b32.xlu0 %v591, 16
      %v608 = vpop.permute.xlu0 %607
      %609 = vrot.lane.b32.xlu0 %v592, 16
      %v610 = vpop.permute.xlu0 %609
      %611 = vrot.lane.b32.xlu0 %v593, 16
      %v612 = vpop.permute.xlu0 %611
      %613 = vrot.lane.b32.xlu0 %v594, 16
      %v614 = vpop.permute.xlu0 %613
      %615 = vrot.lane.b32.xlu0 %v595, 16
      %v616 = vpop.permute.xlu0 %615
      %617 = vrot.lane.b32.xlu0 %v596, 16
      %v618 = vpop.permute.xlu0 %617
      %619 = vrot.lane.b32.xlu0 %v597, 16
      %v620 = vpop.permute.xlu0 %619
      %621 = vrot.lane.b32.xlu0 %v598, 16
      %v622 = vpop.permute.xlu0 %621
      %vm631 = vcmask 195712
      %632 = vst.msk [vmem:[#allocation3] sm:$0xff] %vm631, %v608
      %633 = vst.msk [vmem:[#allocation3 + $0x8] sm:$0xff] %vm631, %v610
      %634 = vst.msk [vmem:[#allocation3 + $0x10] sm:$0xff] %vm631, %v612
      %635 = vst.msk [vmem:[#allocation3 + $0x18] sm:$0xff] %vm631, %v614
      %636 = vst.msk [vmem:[#allocation3 + $0x20] sm:$0xff] %vm631, %v616
      %637 = vst.msk [vmem:[#allocation3 + $0x28] sm:$0xff] %vm631, %v618
      %638 = vst.msk [vmem:[#allocation3 + $0x30] sm:$0xff] %vm631, %v620
      %639 = vst.msk [vmem:[#allocation3 + $0x38] sm:$0xff] %vm631, %v622
      %v640 = vld [vmem:[%s517] sm:$0xff]
      %v641 = vld [vmem:[%s517 + $0x10] sm:$0xff]
      %v642 = vld [vmem:[%s517 + $0x20] sm:$0xff]
      %v643 = vld [vmem:[%s517 + $0x30] sm:$0xff]
      %v644 = vld [vmem:[%s517 + $0x40] sm:$0xff]
      %v645 = vld [vmem:[%s517 + $0x50] sm:$0xff]
      %v646 = vld [vmem:[%s517 + $0x60] sm:$0xff]
      %v647 = vld [vmem:[%s517 + $0x70] sm:$0xff]
      %656 = vrot.lane.b32.xlu0 %v640, 24
      %v657 = vpop.permute.xlu0 %656
      %658 = vrot.lane.b32.xlu0 %v641, 24
      %v659 = vpop.permute.xlu0 %658
      %660 = vrot.lane.b32.xlu0 %v642, 24
      %v661 = vpop.permute.xlu0 %660
      %662 = vrot.lane.b32.xlu0 %v643, 24
      %v663 = vpop.permute.xlu0 %662
      %664 = vrot.lane.b32.xlu0 %v644, 24
      %v665 = vpop.permute.xlu0 %664
      %666 = vrot.lane.b32.xlu0 %v645, 24
      %v667 = vpop.permute.xlu0 %666
      %668 = vrot.lane.b32.xlu0 %v646, 24
      %v669 = vpop.permute.xlu0 %668
      %670 = vrot.lane.b32.xlu0 %v647, 24
      %v671 = vpop.permute.xlu0 %670
      %vm680 = vcmask 261312
      %681 = vst.msk [vmem:[#allocation3] sm:$0xff] %vm680, %v657
      %682 = vst.msk [vmem:[#allocation3 + $0x8] sm:$0xff] %vm680, %v659
      %683 = vst.msk [vmem:[#allocation3 + $0x10] sm:$0xff] %vm680, %v661
      %684 = vst.msk [vmem:[#allocation3 + $0x18] sm:$0xff] %vm680, %v663
      %685 = vst.msk [vmem:[#allocation3 + $0x20] sm:$0xff] %vm680, %v665
      %686 = vst.msk [vmem:[#allocation3 + $0x28] sm:$0xff] %vm680, %v667
      %687 = vst.msk [vmem:[#allocation3 + $0x30] sm:$0xff] %vm680, %v669
      %688 = vst.msk [vmem:[#allocation3 + $0x38] sm:$0xff] %vm680, %v671
      %v689 = vld [vmem:[%s517 + $0x1] sm:$0xff]
      %v690 = vld [vmem:[%s517 + $0x11] sm:$0xff]
      %v691 = vld [vmem:[%s517 + $0x21] sm:$0xff]
      %v692 = vld [vmem:[%s517 + $0x31] sm:$0xff]
      %v693 = vld [vmem:[%s517 + $0x41] sm:$0xff]
      %v694 = vld [vmem:[%s517 + $0x51] sm:$0xff]
      %v695 = vld [vmem:[%s517 + $0x61] sm:$0xff]
      %v696 = vld [vmem:[%s517 + $0x71] sm:$0xff]
      %705 = vrot.lane.b32.xlu0 %v689, 32
      %v706 = vpop.permute.xlu0 %705
      %707 = vrot.lane.b32.xlu0 %v690, 32
      %v708 = vpop.permute.xlu0 %707
      %709 = vrot.lane.b32.xlu0 %v691, 32
      %v710 = vpop.permute.xlu0 %709
      %711 = vrot.lane.b32.xlu0 %v692, 32
      %v712 = vpop.permute.xlu0 %711
      %713 = vrot.lane.b32.xlu0 %v693, 32
      %v714 = vpop.permute.xlu0 %713
      %715 = vrot.lane.b32.xlu0 %v694, 32
      %v716 = vpop.permute.xlu0 %715
      %717 = vrot.lane.b32.xlu0 %v695, 32
      %v718 = vpop.permute.xlu0 %717
      %719 = vrot.lane.b32.xlu0 %v696, 32
      %v720 = vpop.permute.xlu0 %719
      %vm729 = vcmask 326912
      %730 = vst.msk [vmem:[#allocation3] sm:$0xff] %vm729, %v706
      %731 = vst.msk [vmem:[#allocation3 + $0x8] sm:$0xff] %vm729, %v708
      %732 = vst.msk [vmem:[#allocation3 + $0x10] sm:$0xff] %vm729, %v710
      %733 = vst.msk [vmem:[#allocation3 + $0x18] sm:$0xff] %vm729, %v712
      %734 = vst.msk [vmem:[#allocation3 + $0x20] sm:$0xff] %vm729, %v714
      %735 = vst.msk [vmem:[#allocation3 + $0x28] sm:$0xff] %vm729, %v716
      %736 = vst.msk [vmem:[#allocation3 + $0x30] sm:$0xff] %vm729, %v718
      %737 = vst.msk [vmem:[#allocation3 + $0x38] sm:$0xff] %vm729, %v720
      %v738 = vld [vmem:[%s517 + $0x2] sm:$0xff]
      %v739 = vld [vmem:[%s517 + $0x12] sm:$0xff]
      %v740 = vld [vmem:[%s517 + $0x22] sm:$0xff]
      %v741 = vld [vmem:[%s517 + $0x32] sm:$0xff]
      %v742 = vld [vmem:[%s517 + $0x42] sm:$0xff]
      %v743 = vld [vmem:[%s517 + $0x52] sm:$0xff]
      %v744 = vld [vmem:[%s517 + $0x62] sm:$0xff]
      %v745 = vld [vmem:[%s517 + $0x72] sm:$0xff]
      %754 = vrot.lane.b32.xlu0 %v738, 40
      %v755 = vpop.permute.xlu0 %754
      %756 = vrot.lane.b32.xlu0 %v739, 40
      %v757 = vpop.permute.xlu0 %756
      %758 = vrot.lane.b32.xlu0 %v740, 40
      %v759 = vpop.permute.xlu0 %758
      %760 = vrot.lane.b32.xlu0 %v741, 40
      %v761 = vpop.permute.xlu0 %760
      %762 = vrot.lane.b32.xlu0 %v742, 40
      %v763 = vpop.permute.xlu0 %762
      %764 = vrot.lane.b32.xlu0 %v743, 40
      %v765 = vpop.permute.xlu0 %764
      %766 = vrot.lane.b32.xlu0 %v744, 40
      %v767 = vpop.permute.xlu0 %766
      %768 = vrot.lane.b32.xlu0 %v745, 40
      %v769 = vpop.permute.xlu0 %768
      %vm778 = vcmask 392512
      %779 = vst.msk [vmem:[#allocation3] sm:$0xff] %vm778, %v755
      %780 = vst.msk [vmem:[#allocation3 + $0x8] sm:$0xff] %vm778, %v757
      %781 = vst.msk [vmem:[#allocation3 + $0x10] sm:$0xff] %vm778, %v759
      %782 = vst.msk [vmem:[#allocation3 + $0x18] sm:$0xff] %vm778, %v761
      %783 = vst.msk [vmem:[#allocation3 + $0x20] sm:$0xff] %vm778, %v763
      %784 = vst.msk [vmem:[#allocation3 + $0x28] sm:$0xff] %vm778, %v765
      %785 = vst.msk [vmem:[#allocation3 + $0x30] sm:$0xff] %vm778, %v767
      %786 = vst.msk [vmem:[#allocation3 + $0x38] sm:$0xff] %vm778, %v769
      %s787 = scalar_lea.vmem [#allocation2], 32
      %v788 = vld [vmem:[%s787] sm:$0xff]
      %v789 = vld [vmem:[%s787 + $0x10] sm:$0xff]
      %v790 = vld [vmem:[%s787 + $0x20] sm:$0xff]
      %v791 = vld [vmem:[%s787 + $0x30] sm:$0xff]
      %v792 = vld [vmem:[%s787 + $0x40] sm:$0xff]
      %v793 = vld [vmem:[%s787 + $0x50] sm:$0xff]
      %v794 = vld [vmem:[%s787 + $0x60] sm:$0xff]
      %v795 = vld [vmem:[%s787 + $0x70] sm:$0xff]
      %804 = vrot.lane.b32.xlu0 %v788, 48
      %v805 = vpop.permute.xlu0 %804
      %806 = vrot.lane.b32.xlu0 %v789, 48
      %v807 = vpop.permute.xlu0 %806
      %808 = vrot.lane.b32.xlu0 %v790, 48
      %v809 = vpop.permute.xlu0 %808
      %810 = vrot.lane.b32.xlu0 %v791, 48
      %v811 = vpop.permute.xlu0 %810
      %812 = vrot.lane.b32.xlu0 %v792, 48
      %v813 = vpop.permute.xlu0 %812
      %814 = vrot.lane.b32.xlu0 %v793, 48
      %v815 = vpop.permute.xlu0 %814
      %816 = vrot.lane.b32.xlu0 %v794, 48
      %v817 = vpop.permute.xlu0 %816
      %818 = vrot.lane.b32.xlu0 %v795, 48
      %v819 = vpop.permute.xlu0 %818
      %vm828 = vcmask 458112
      %829 = vst.msk [vmem:[#allocation3] sm:$0xff] %vm828, %v805
      %830 = vst.msk [vmem:[#allocation3 + $0x8] sm:$0xff] %vm828, %v807
      %831 = vst.msk [vmem:[#allocation3 + $0x10] sm:$0xff] %vm828, %v809
      %832 = vst.msk [vmem:[#allocation3 + $0x18] sm:$0xff] %vm828, %v811
      %833 = vst.msk [vmem:[#allocation3 + $0x20] sm:$0xff] %vm828, %v813
      %834 = vst.msk [vmem:[#allocation3 + $0x28] sm:$0xff] %vm828, %v815
      %835 = vst.msk [vmem:[#allocation3 + $0x30] sm:$0xff] %vm828, %v817
      %836 = vst.msk [vmem:[#allocation3 + $0x38] sm:$0xff] %vm828, %v819
      %v837 = vld [vmem:[%s787 + $0x1] sm:$0xff]
      %v838 = vld [vmem:[%s787 + $0x11] sm:$0xff]
      %v839 = vld [vmem:[%s787 + $0x21] sm:$0xff]
      %v840 = vld [vmem:[%s787 + $0x31] sm:$0xff]
      %v841 = vld [vmem:[%s787 + $0x41] sm:$0xff]
      %v842 = vld [vmem:[%s787 + $0x51] sm:$0xff]
      %v843 = vld [vmem:[%s787 + $0x61] sm:$0xff]
      %v844 = vld [vmem:[%s787 + $0x71] sm:$0xff]
      %853 = vrot.lane.b32.xlu0 %v837, 56
      %v854 = vpop.permute.xlu0 %853
      %855 = vrot.lane.b32.xlu0 %v838, 56
      %v856 = vpop.permute.xlu0 %855
      %857 = vrot.lane.b32.xlu0 %v839, 56
      %v858 = vpop.permute.xlu0 %857
      %859 = vrot.lane.b32.xlu0 %v840, 56
      %v860 = vpop.permute.xlu0 %859
      %861 = vrot.lane.b32.xlu0 %v841, 56
      %v862 = vpop.permute.xlu0 %861
      %863 = vrot.lane.b32.xlu0 %v842, 56
      %v864 = vpop.permute.xlu0 %863
      %865 = vrot.lane.b32.xlu0 %v843, 56
      %v866 = vpop.permute.xlu0 %865
      %867 = vrot.lane.b32.xlu0 %v844, 56
      %v868 = vpop.permute.xlu0 %867
      %vm877 = vcmask 523712
      %878 = vst.msk [vmem:[#allocation3] sm:$0xff] %vm877, %v854
      %879 = vst.msk [vmem:[#allocation3 + $0x8] sm:$0xff] %vm877, %v856
      %880 = vst.msk [vmem:[#allocation3 + $0x10] sm:$0xff] %vm877, %v858
      %881 = vst.msk [vmem:[#allocation3 + $0x18] sm:$0xff] %vm877, %v860
      %882 = vst.msk [vmem:[#allocation3 + $0x20] sm:$0xff] %vm877, %v862
      %883 = vst.msk [vmem:[#allocation3 + $0x28] sm:$0xff] %vm877, %v864
      %884 = vst.msk [vmem:[#allocation3 + $0x30] sm:$0xff] %vm877, %v866
      %885 = vst.msk [vmem:[#allocation3 + $0x38] sm:$0xff] %vm877, %v868
      %v886 = vld [vmem:[%s787 + $0x2] sm:$0xff]
      %v887 = vld [vmem:[%s787 + $0x12] sm:$0xff]
      %v888 = vld [vmem:[%s787 + $0x22] sm:$0xff]
      %v889 = vld [vmem:[%s787 + $0x32] sm:$0xff]
      %v890 = vld [vmem:[%s787 + $0x42] sm:$0xff]
      %v891 = vld [vmem:[%s787 + $0x52] sm:$0xff]
      %v892 = vld [vmem:[%s787 + $0x62] sm:$0xff]
      %v893 = vld [vmem:[%s787 + $0x72] sm:$0xff]
      %902 = vrot.lane.b32.xlu0 %v886, 64
      %v903 = vpop.permute.xlu0 %902
      %904 = vrot.lane.b32.xlu0 %v887, 64
      %v905 = vpop.permute.xlu0 %904
      %906 = vrot.lane.b32.xlu0 %v888, 64
      %v907 = vpop.permute.xlu0 %906
      %908 = vrot.lane.b32.xlu0 %v889, 64
      %v909 = vpop.permute.xlu0 %908
      %910 = vrot.lane.b32.xlu0 %v890, 64
      %v911 = vpop.permute.xlu0 %910
      %912 = vrot.lane.b32.xlu0 %v891, 64
      %v913 = vpop.permute.xlu0 %912
      %914 = vrot.lane.b32.xlu0 %v892, 64
      %v915 = vpop.permute.xlu0 %914
      %916 = vrot.lane.b32.xlu0 %v893, 64
      %v917 = vpop.permute.xlu0 %916
      %vm926 = vcmask 589312
      %927 = vst.msk [vmem:[#allocation3] sm:$0xff] %vm926, %v903
      %928 = vst.msk [vmem:[#allocation3 + $0x8] sm:$0xff] %vm926, %v905
      %929 = vst.msk [vmem:[#allocation3 + $0x10] sm:$0xff] %vm926, %v907
      %930 = vst.msk [vmem:[#allocation3 + $0x18] sm:$0xff] %vm926, %v909
      %931 = vst.msk [vmem:[#allocation3 + $0x20] sm:$0xff] %vm926, %v911
      %932 = vst.msk [vmem:[#allocation3 + $0x28] sm:$0xff] %vm926, %v913
      %933 = vst.msk [vmem:[#allocation3 + $0x30] sm:$0xff] %vm926, %v915
      %934 = vst.msk [vmem:[#allocation3 + $0x38] sm:$0xff] %vm926, %v917
      %v935 = vld [vmem:[#allocation3] sm:$0xff]
      %v936 = vld [vmem:[#allocation3 + $0x8] sm:$0xff]
      %v937 = vld [vmem:[#allocation3 + $0x10] sm:$0xff]
      %v938 = vld [vmem:[#allocation3 + $0x18] sm:$0xff]
      %v939 = vld [vmem:[#allocation3 + $0x20] sm:$0xff]
      %v940 = vld [vmem:[#allocation3 + $0x28] sm:$0xff]
      %v941 = vld [vmem:[#allocation3 + $0x30] sm:$0xff]
      %v942 = vld [vmem:[#allocation3 + $0x38] sm:$0xff]
      %v943 = vld [vmem:[%s3] sm:$0xff]
      %v944 = vld [vmem:[%s3 + $0x8] sm:$0xff]
      %v945 = vld [vmem:[%s3 + $0x10] sm:$0xff]
      %v946 = vld [vmem:[%s3 + $0x18] sm:$0xff]
      %v947 = vld [vmem:[%s3 + $0x20] sm:$0xff]
      %v948 = vld [vmem:[%s3 + $0x28] sm:$0xff]
      %v949 = vld [vmem:[%s3 + $0x30] sm:$0xff]
      %v950 = vld [vmem:[%s3 + $0x38] sm:$0xff]
      %v951 = vld [vmem:[%s3 + $0x40] sm:$0xff]
      %v952 = vld [vmem:[%s4] sm:$0x1]
      %v954 = vlaneseq
      %v955 = vshrl.u32 %v954, 7
      %v956 = vsub.s32 0, %v955
      %v957 = vrot.slane %v952, %v956
      %vm959 = vcmask 588800
      %v961 = vsel %vm959, %v935, 0
      %v964 = vsel %vm959, %v936, 0
      %v967 = vsel %vm959, %v937, 0
      %v970 = vsel %vm959, %v938, 0
      %v973 = vsel %vm959, %v939, 0
      %v976 = vsel %vm959, %v940, 0
      %v979 = vsel %vm959, %v941, 0
      %v982 = vsel %vm959, %v942, 0
      %984 = vmatprep.subr.mxu0 0.0
      %985 = vmatpush1.msra.mxu0 %v943
      %986 = vmatprep.subr.mxu0 0.0
      %987 = vmatpush1.msra.mxu0 %v944
      %988 = vmatprep.subr.mxu0 0.0
      %989 = vmatpush1.msra.mxu0 %v945
      %990 = vmatprep.subr.mxu0 0.0
      %991 = vmatpush1.msra.mxu0 %v946
      %992 = vmatprep.subr.mxu0 0.0
      %993 = vmatpush1.msra.mxu0 %v947
      %994 = vmatprep.subr.mxu0 0.0
      %995 = vmatpush1.msra.mxu0 %v948
      %996 = vmatprep.subr.mxu0 0.0
      %997 = vmatpush1.msra.mxu0 %v949
      %998 = vmatprep.subr.mxu0 0.0
      %999 = vmatpush1.msra.mxu0 %v950
      %1000 = vmatprep.subr.mxu0 0.0
      %1001 = vmatpush1.msra.mxu0 %v951
      %1002 = vmatprep.subr.mxu0 0.0
      %1003 = vmatpush1.msra.mxu0 0.0
      %1004 = vmatprep.subr.mxu0 0.0
      %1005 = vmatpush1.msra.mxu0 0.0
      %1006 = vmatprep.subr.mxu0 0.0
      %1007 = vmatpush1.msra.mxu0 0.0
      %1008 = vmatprep.subr.mxu0 0.0
      %1009 = vmatpush1.msra.mxu0 0.0
      %1010 = vmatprep.subr.mxu0 0.0
      %1011 = vmatpush1.msra.mxu0 0.0
      %1012 = vmatprep.subr.mxu0 0.0
      %1013 = vmatpush1.msra.mxu0 0.0
      %1014 = vmatprep.subr.mxu0 0.0
      %1015 = vmatpush1.msra.mxu0 0.0
      %1016 = vmatprep.subr.mxu0 0.0
      %1017 = vmatpush1.msra.mxu0 0.0
      %1018 = vmatprep.subr.mxu0 0.0
      %1019 = vmatpush1.msra.mxu0 0.0
      %1020 = vmatprep.subr.mxu0 0.0
      %1021 = vmatpush1.msra.mxu0 0.0
      %1022 = vmatprep.subr.mxu0 0.0
      %1023 = vmatpush1.msra.mxu0 0.0
      %1024 = vmatprep.subr.mxu0 0.0
      %1025 = vmatpush1.msra.mxu0 0.0
      %1026 = vmatprep.subr.mxu0 0.0
      %1027 = vmatpush1.msra.mxu0 0.0
      %1028 = vmatprep.subr.mxu0 0.0
      %1029 = vmatpush1.msra.mxu0 0.0
      %1030 = vmatprep.subr.mxu0 0.0
      %1031 = vmatpush1.msra.mxu0 0.0
      %1032 = vmatprep.subr.mxu0 0.0
      %1033 = vmatpush1.msra.mxu0 0.0
      %1034 = vmatprep.subr.mxu0 0.0
      %1035 = vmatpush1.msra.mxu0 0.0
      %1036 = vmatprep.subr.mxu0 0.0
      %1037 = vmatpush1.msra.mxu0 0.0
      %1038 = vmatprep.subr.mxu0 0.0
      %1039 = vmatpush1.msra.mxu0 0.0
      %1040 = vmatprep.subr.mxu0 0.0
      %1041 = vmatpush1.msra.mxu0 0.0
      %1042 = vmatprep.subr.mxu0 0.0
      %1043 = vmatpush1.msra.mxu0 0.0
      %1044 = vmatprep.subr.mxu0 0.0
      %1045 = vmatpush1.msra.mxu0 0.0
      %1046 = vmatprep.subr.mxu0 0.0
      %1047 = vmatpush1.msra.mxu0 0.0
      %1048 = vmatprep.mubr.f32.mxu0 0.0
      %1049 = vmatmul.mubr.f32.gmra.mrb[0].mxu0 %v961
      %v1050 = vpop.f32.mrb[0].mxu0
      %v1051 = vadd.f32 %v957, %v1050
      %v1052 = vpop.f32.mrb[0].mxu0
      %1053 = vmatprep.mubr.f32.mxu0 0.0
      %1054 = vmatmul.mubr.f32.gmra.mrb[0].mxu0 %v964
      %v1055 = vpop.f32.mrb[0].mxu0
      %v1056 = vadd.f32 %v957, %v1055
      %v1057 = vpop.f32.mrb[0].mxu0
      %1058 = vmatprep.mubr.f32.mxu0 0.0
      %1059 = vmatmul.mubr.f32.gmra.mrb[0].mxu0 %v967
      %v1060 = vpop.f32.mrb[0].mxu0
      %v1061 = vadd.f32 %v957, %v1060
      %v1062 = vpop.f32.mrb[0].mxu0
      %1063 = vmatprep.mubr.f32.mxu0 0.0
      %1064 = vmatmul.mubr.f32.gmra.mrb[0].mxu0 %v970
      %v1065 = vpop.f32.mrb[0].mxu0
      %v1066 = vadd.f32 %v957, %v1065
      %v1067 = vpop.f32.mrb[0].mxu0
      %1068 = vmatprep.mubr.f32.mxu0 0.0
      %1069 = vmatmul.mubr.f32.gmra.mrb[0].mxu0 %v973
      %v1070 = vpop.f32.mrb[0].mxu0
      %v1071 = vadd.f32 %v957, %v1070
      %v1072 = vpop.f32.mrb[0].mxu0
      %1073 = vmatprep.mubr.f32.mxu0 0.0
      %1074 = vmatmul.mubr.f32.gmra.mrb[0].mxu0 %v976
      %v1075 = vpop.f32.mrb[0].mxu0
      %v1076 = vadd.f32 %v957, %v1075
      %v1077 = vpop.f32.mrb[0].mxu0
      %1078 = vmatprep.mubr.f32.mxu0 0.0
      %1079 = vmatmul.mubr.f32.gmra.mrb[0].mxu0 %v979
      %v1080 = vpop.f32.mrb[0].mxu0
      %v1081 = vadd.f32 %v957, %v1080
      %v1082 = vpop.f32.mrb[0].mxu0
      %1083 = vmatprep.mubr.f32.mxu0 0.0
      %1084 = vmatmul.mubr.f32.gmra.mrb[0].mxu0 %v982
      %v1085 = vpop.f32.mrb[0].mxu0
      %v1086 = vadd.f32 %v957, %v1085
      %v1087 = vpop.f32.mrb[0].mxu0
      %1088 = vdwg.mxu0
      %v1089 = vmax.f32 %v1051, 0.0
      %v1090 = vmax.f32 %v1056, 0.0
      %v1091 = vmax.f32 %v1061, 0.0
      %v1092 = vmax.f32 %v1066, 0.0
      %v1093 = vmax.f32 %v1071, 0.0
      %v1094 = vmax.f32 %v1076, 0.0
      %v1095 = vmax.f32 %v1081, 0.0
      %v1096 = vmax.f32 %v1086, 0.0
      %1105 = vrot.lane.b32.xlu0 %v471, 120
      %v1106 = vpop.permute.xlu0 %1105
      %1107 = vrot.lane.b32.xlu0 %v476, 120
      %v1108 = vpop.permute.xlu0 %1107
      %1109 = vrot.lane.b32.xlu0 %v481, 120
      %v1110 = vpop.permute.xlu0 %1109
      %1111 = vrot.lane.b32.xlu0 %v486, 120
      %v1112 = vpop.permute.xlu0 %1111
      %1113 = vrot.lane.b32.xlu0 %v491, 120
      %v1114 = vpop.permute.xlu0 %1113
      %1115 = vrot.lane.b32.xlu0 %v496, 120
      %v1116 = vpop.permute.xlu0 %1115
      %1117 = vrot.lane.b32.xlu0 %v501, 120
      %v1118 = vpop.permute.xlu0 %1117
      %1119 = vrot.lane.b32.xlu0 %v506, 120
      %v1120 = vpop.permute.xlu0 %1119
      %v1129 = vadd.f32 %v1089, %v1106
      %v1130 = vadd.f32 %v1090, %v1108
      %v1131 = vadd.f32 %v1091, %v1110
      %v1132 = vadd.f32 %v1092, %v1112
      %v1133 = vadd.f32 %v1093, %v1114
      %v1134 = vadd.f32 %v1094, %v1116
      %v1135 = vadd.f32 %v1095, %v1118
      %v1136 = vadd.f32 %v1096, %v1120
      %1137 = vst.msk [vmem:[%s517 + $0x1] sm:$0xff] %vm333, %v1129
      %1138 = vst.msk [vmem:[%s517 + $0x11] sm:$0xff] %vm333, %v1130
      %1139 = vst.msk [vmem:[%s517 + $0x21] sm:$0xff] %vm333, %v1131
      %1140 = vst.msk [vmem:[%s517 + $0x31] sm:$0xff] %vm333, %v1132
      %1141 = vst.msk [vmem:[%s517 + $0x41] sm:$0xff] %vm333, %v1133
      %1142 = vst.msk [vmem:[%s517 + $0x51] sm:$0xff] %vm333, %v1134
      %1143 = vst.msk [vmem:[%s517 + $0x61] sm:$0xff] %vm333, %v1135
      %1144 = vst.msk [vmem:[%s517 + $0x71] sm:$0xff] %vm333, %v1136
      %v1145 = vld [vmem:[#allocation2] sm:$0xff]
      %v1146 = vld [vmem:[#allocation2 + $0x10] sm:$0xff]
      %v1147 = vld [vmem:[#allocation2 + $0x20] sm:$0xff]
      %v1148 = vld [vmem:[#allocation2 + $0x30] sm:$0xff]
      %v1149 = vld [vmem:[#allocation2 + $0x40] sm:$0xff]
      %v1150 = vld [vmem:[#allocation2 + $0x50] sm:$0xff]
      %v1151 = vld [vmem:[#allocation2 + $0x60] sm:$0xff]
      %v1152 = vld [vmem:[#allocation2 + $0x70] sm:$0xff]
      %1153 = vst.msk [vmem:[#allocation3] sm:$0xff] %vm333, %v1145
      %1154 = vst.msk [vmem:[#allocation3 + $0x8] sm:$0xff] %vm333, %v1146
      %1155 = vst.msk [vmem:[#allocation3 + $0x10] sm:$0xff] %vm333, %v1147
      %1156 = vst.msk [vmem:[#allocation3 + $0x18] sm:$0xff] %vm333, %v1148
      %1157 = vst.msk [vmem:[#allocation3 + $0x20] sm:$0xff] %vm333, %v1149
      %1158 = vst.msk [vmem:[#allocation3 + $0x28] sm:$0xff] %vm333, %v1150
      %1159 = vst.msk [vmem:[#allocation3 + $0x30] sm:$0xff] %vm333, %v1151
      %1160 = vst.msk [vmem:[#allocation3 + $0x38] sm:$0xff] %vm333, %v1152
      %v1161 = vld [vmem:[#allocation2 + $0x1] sm:$0xff]
      %v1162 = vld [vmem:[#allocation2 + $0x11] sm:$0xff]
      %v1163 = vld [vmem:[#allocation2 + $0x21] sm:$0xff]
      %v1164 = vld [vmem:[#allocation2 + $0x31] sm:$0xff]
      %v1165 = vld [vmem:[#allocation2 + $0x41] sm:$0xff]
      %v1166 = vld [vmem:[#allocation2 + $0x51] sm:$0xff]
      %v1167 = vld [vmem:[#allocation2 + $0x61] sm:$0xff]
      %v1168 = vld [vmem:[#allocation2 + $0x71] sm:$0xff]
      %1177 = vrot.lane.b32.xlu0 %v1161, 8
      %v1178 = vpop.permute.xlu0 %1177
      %1179 = vrot.lane.b32.xlu0 %v1162, 8
      %v1180 = vpop.permute.xlu0 %1179
      %1181 = vrot.lane.b32.xlu0 %v1163, 8
      %v1182 = vpop.permute.xlu0 %1181
      %1183 = vrot.lane.b32.xlu0 %v1164, 8
      %v1184 = vpop.permute.xlu0 %1183
      %1185 = vrot.lane.b32.xlu0 %v1165, 8
      %v1186 = vpop.permute.xlu0 %1185
      %1187 = vrot.lane.b32.xlu0 %v1166, 8
      %v1188 = vpop.permute.xlu0 %1187
      %1189 = vrot.lane.b32.xlu0 %v1167, 8
      %v1190 = vpop.permute.xlu0 %1189
      %1191 = vrot.lane.b32.xlu0 %v1168, 8
      %v1192 = vpop.permute.xlu0 %1191
      %1201 = vst.msk [vmem:[#allocation3] sm:$0xff] %vm582, %v1178
      %1202 = vst.msk [vmem:[#allocation3 + $0x8] sm:$0xff] %vm582, %v1180
      %1203 = vst.msk [vmem:[#allocation3 + $0x10] sm:$0xff] %vm582, %v1182
      %1204 = vst.msk [vmem:[#allocation3 + $0x18] sm:$0xff] %vm582, %v1184
      %1205 = vst.msk [vmem:[#allocation3 + $0x20] sm:$0xff] %vm582, %v1186
      %1206 = vst.msk [vmem:[#allocation3 + $0x28] sm:$0xff] %vm582, %v1188
      %1207 = vst.msk [vmem:[#allocation3 + $0x30] sm:$0xff] %vm582, %v1190
      %1208 = vst.msk [vmem:[#allocation3 + $0x38] sm:$0xff] %vm582, %v1192
      %v1209 = vld [vmem:[#allocation2 + $0x2] sm:$0xff]
      %v1210 = vld [vmem:[#allocation2 + $0x12] sm:$0xff]
      %v1211 = vld [vmem:[#allocation2 + $0x22] sm:$0xff]
      %v1212 = vld [vmem:[#allocation2 + $0x32] sm:$0xff]
      %v1213 = vld [vmem:[#allocation2 + $0x42] sm:$0xff]
      %v1214 = vld [vmem:[#allocation2 + $0x52] sm:$0xff]
      %v1215 = vld [vmem:[#allocation2 + $0x62] sm:$0xff]
      %v1216 = vld [vmem:[#allocation2 + $0x72] sm:$0xff]
      %1225 = vrot.lane.b32.xlu0 %v1209, 16
      %v1226 = vpop.permute.xlu0 %1225
      %1227 = vrot.lane.b32.xlu0 %v1210, 16
      %v1228 = vpop.permute.xlu0 %1227
      %1229 = vrot.lane.b32.xlu0 %v1211, 16
      %v1230 = vpop.permute.xlu0 %1229
      %1231 = vrot.lane.b32.xlu0 %v1212, 16
      %v1232 = vpop.permute.xlu0 %1231
      %1233 = vrot.lane.b32.xlu0 %v1213, 16
      %v1234 = vpop.permute.xlu0 %1233
      %1235 = vrot.lane.b32.xlu0 %v1214, 16
      %v1236 = vpop.permute.xlu0 %1235
      %1237 = vrot.lane.b32.xlu0 %v1215, 16
      %v1238 = vpop.permute.xlu0 %1237
      %1239 = vrot.lane.b32.xlu0 %v1216, 16
      %v1240 = vpop.permute.xlu0 %1239
      %1249 = vst.msk [vmem:[#allocation3] sm:$0xff] %vm631, %v1226
      %1250 = vst.msk [vmem:[#allocation3 + $0x8] sm:$0xff] %vm631, %v1228
      %1251 = vst.msk [vmem:[#allocation3 + $0x10] sm:$0xff] %vm631, %v1230
      %1252 = vst.msk [vmem:[#allocation3 + $0x18] sm:$0xff] %vm631, %v1232
      %1253 = vst.msk [vmem:[#allocation3 + $0x20] sm:$0xff] %vm631, %v1234
      %1254 = vst.msk [vmem:[#allocation3 + $0x28] sm:$0xff] %vm631, %v1236
      %1255 = vst.msk [vmem:[#allocation3 + $0x30] sm:$0xff] %vm631, %v1238
      %1256 = vst.msk [vmem:[#allocation3 + $0x38] sm:$0xff] %vm631, %v1240
      %v1257 = vld [vmem:[%s517] sm:$0xff]
      %v1258 = vld [vmem:[%s517 + $0x10] sm:$0xff]
      %v1259 = vld [vmem:[%s517 + $0x20] sm:$0xff]
      %v1260 = vld [vmem:[%s517 + $0x30] sm:$0xff]
      %v1261 = vld [vmem:[%s517 + $0x40] sm:$0xff]
      %v1262 = vld [vmem:[%s517 + $0x50] sm:$0xff]
      %v1263 = vld [vmem:[%s517 + $0x60] sm:$0xff]
      %v1264 = vld [vmem:[%s517 + $0x70] sm:$0xff]
      %1273 = vrot.lane.b32.xlu0 %v1257, 24
      %v1274 = vpop.permute.xlu0 %1273
      %1275 = vrot.lane.b32.xlu0 %v1258, 24
      %v1276 = vpop.permute.xlu0 %1275
      %1277 = vrot.lane.b32.xlu0 %v1259, 24
      %v1278 = vpop.permute.xlu0 %1277
      %1279 = vrot.lane.b32.xlu0 %v1260, 24
      %v1280 = vpop.permute.xlu0 %1279
      %1281 = vrot.lane.b32.xlu0 %v1261, 24
      %v1282 = vpop.permute.xlu0 %1281
      %1283 = vrot.lane.b32.xlu0 %v1262, 24
      %v1284 = vpop.permute.xlu0 %1283
      %1285 = vrot.lane.b32.xlu0 %v1263, 24
      %v1286 = vpop.permute.xlu0 %1285
      %1287 = vrot.lane.b32.xlu0 %v1264, 24
      %v1288 = vpop.permute.xlu0 %1287
      %1297 = vst.msk [vmem:[#allocation3] sm:$0xff] %vm680, %v1274
      %1298 = vst.msk [vmem:[#allocation3 + $0x8] sm:$0xff] %vm680, %v1276
      %1299 = vst.msk [vmem:[#allocation3 + $0x10] sm:$0xff] %vm680, %v1278
      %1300 = vst.msk [vmem:[#allocation3 + $0x18] sm:$0xff] %vm680, %v1280
      %1301 = vst.msk [vmem:[#allocation3 + $0x20] sm:$0xff] %vm680, %v1282
      %1302 = vst.msk [vmem:[#allocation3 + $0x28] sm:$0xff] %vm680, %v1284
      %1303 = vst.msk [vmem:[#allocation3 + $0x30] sm:$0xff] %vm680, %v1286
      %1304 = vst.msk [vmem:[#allocation3 + $0x38] sm:$0xff] %vm680, %v1288
      %v1305 = vld [vmem:[%s517 + $0x1] sm:$0xff]
      %v1306 = vld [vmem:[%s517 + $0x11] sm:$0xff]
      %v1307 = vld [vmem:[%s517 + $0x21] sm:$0xff]
      %v1308 = vld [vmem:[%s517 + $0x31] sm:$0xff]
      %v1309 = vld [vmem:[%s517 + $0x41] sm:$0xff]
      %v1310 = vld [vmem:[%s517 + $0x51] sm:$0xff]
      %v1311 = vld [vmem:[%s517 + $0x61] sm:$0xff]
      %v1312 = vld [vmem:[%s517 + $0x71] sm:$0xff]
      %1321 = vrot.lane.b32.xlu0 %v1305, 32
      %v1322 = vpop.permute.xlu0 %1321
      %1323 = vrot.lane.b32.xlu0 %v1306, 32
      %v1324 = vpop.permute.xlu0 %1323
      %1325 = vrot.lane.b32.xlu0 %v1307, 32
      %v1326 = vpop.permute.xlu0 %1325
      %1327 = vrot.lane.b32.xlu0 %v1308, 32
      %v1328 = vpop.permute.xlu0 %1327
      %1329 = vrot.lane.b32.xlu0 %v1309, 32
      %v1330 = vpop.permute.xlu0 %1329
      %1331 = vrot.lane.b32.xlu0 %v1310, 32
      %v1332 = vpop.permute.xlu0 %1331
      %1333 = vrot.lane.b32.xlu0 %v1311, 32
      %v1334 = vpop.permute.xlu0 %1333
      %1335 = vrot.lane.b32.xlu0 %v1312, 32
      %v1336 = vpop.permute.xlu0 %1335
      %1345 = vst.msk [vmem:[#allocation3] sm:$0xff] %vm729, %v1322
      %1346 = vst.msk [vmem:[#allocation3 + $0x8] sm:$0xff] %vm729, %v1324
      %1347 = vst.msk [vmem:[#allocation3 + $0x10] sm:$0xff] %vm729, %v1326
      %1348 = vst.msk [vmem:[#allocation3 + $0x18] sm:$0xff] %vm729, %v1328
      %1349 = vst.msk [vmem:[#allocation3 + $0x20] sm:$0xff] %vm729, %v1330
      %1350 = vst.msk [vmem:[#allocation3 + $0x28] sm:$0xff] %vm729, %v1332
      %1351 = vst.msk [vmem:[#allocation3 + $0x30] sm:$0xff] %vm729, %v1334
      %1352 = vst.msk [vmem:[#allocation3 + $0x38] sm:$0xff] %vm729, %v1336
      %v1353 = vld [vmem:[%s517 + $0x2] sm:$0xff]
      %v1354 = vld [vmem:[%s517 + $0x12] sm:$0xff]
      %v1355 = vld [vmem:[%s517 + $0x22] sm:$0xff]
      %v1356 = vld [vmem:[%s517 + $0x32] sm:$0xff]
      %v1357 = vld [vmem:[%s517 + $0x42] sm:$0xff]
      %v1358 = vld [vmem:[%s517 + $0x52] sm:$0xff]
      %v1359 = vld [vmem:[%s517 + $0x62] sm:$0xff]
      %v1360 = vld [vmem:[%s517 + $0x72] sm:$0xff]
      %1369 = vrot.lane.b32.xlu0 %v1353, 40
      %v1370 = vpop.permute.xlu0 %1369
      %1371 = vrot.lane.b32.xlu0 %v1354, 40
      %v1372 = vpop.permute.xlu0 %1371
      %1373 = vrot.lane.b32.xlu0 %v1355, 40
      %v1374 = vpop.permute.xlu0 %1373
      %1375 = vrot.lane.b32.xlu0 %v1356, 40
      %v1376 = vpop.permute.xlu0 %1375
      %1377 = vrot.lane.b32.xlu0 %v1357, 40
      %v1378 = vpop.permute.xlu0 %1377
      %1379 = vrot.lane.b32.xlu0 %v1358, 40
      %v1380 = vpop.permute.xlu0 %1379
      %1381 = vrot.lane.b32.xlu0 %v1359, 40
      %v1382 = vpop.permute.xlu0 %1381
      %1383 = vrot.lane.b32.xlu0 %v1360, 40
      %v1384 = vpop.permute.xlu0 %1383
      %1393 = vst.msk [vmem:[#allocation3] sm:$0xff] %vm778, %v1370
      %1394 = vst.msk [vmem:[#allocation3 + $0x8] sm:$0xff] %vm778, %v1372
      %1395 = vst.msk [vmem:[#allocation3 + $0x10] sm:$0xff] %vm778, %v1374
      %1396 = vst.msk [vmem:[#allocation3 + $0x18] sm:$0xff] %vm778, %v1376
      %1397 = vst.msk [vmem:[#allocation3 + $0x20] sm:$0xff] %vm778, %v1378
      %1398 = vst.msk [vmem:[#allocation3 + $0x28] sm:$0xff] %vm778, %v1380
      %1399 = vst.msk [vmem:[#allocation3 + $0x30] sm:$0xff] %vm778, %v1382
      %1400 = vst.msk [vmem:[#allocation3 + $0x38] sm:$0xff] %vm778, %v1384
      %v1401 = vld [vmem:[%s787] sm:$0xff]
      %v1402 = vld [vmem:[%s787 + $0x10] sm:$0xff]
      %v1403 = vld [vmem:[%s787 + $0x20] sm:$0xff]
      %v1404 = vld [vmem:[%s787 + $0x30] sm:$0xff]
      %v1405 = vld [vmem:[%s787 + $0x40] sm:$0xff]
      %v1406 = vld [vmem:[%s787 + $0x50] sm:$0xff]
      %v1407 = vld [vmem:[%s787 + $0x60] sm:$0xff]
      %v1408 = vld [vmem:[%s787 + $0x70] sm:$0xff]
      %1417 = vrot.lane.b32.xlu0 %v1401, 48
      %v1418 = vpop.permute.xlu0 %1417
      %1419 = vrot.lane.b32.xlu0 %v1402, 48
      %v1420 = vpop.permute.xlu0 %1419
      %1421 = vrot.lane.b32.xlu0 %v1403, 48
      %v1422 = vpop.permute.xlu0 %1421
      %1423 = vrot.lane.b32.xlu0 %v1404, 48
      %v1424 = vpop.permute.xlu0 %1423
      %1425 = vrot.lane.b32.xlu0 %v1405, 48
      %v1426 = vpop.permute.xlu0 %1425
      %1427 = vrot.lane.b32.xlu0 %v1406, 48
      %v1428 = vpop.permute.xlu0 %1427
      %1429 = vrot.lane.b32.xlu0 %v1407, 48
      %v1430 = vpop.permute.xlu0 %1429
      %1431 = vrot.lane.b32.xlu0 %v1408, 48
      %v1432 = vpop.permute.xlu0 %1431
      %1441 = vst.msk [vmem:[#allocation3] sm:$0xff] %vm828, %v1418
      %1442 = vst.msk [vmem:[#allocation3 + $0x8] sm:$0xff] %vm828, %v1420
      %1443 = vst.msk [vmem:[#allocation3 + $0x10] sm:$0xff] %vm828, %v1422
      %1444 = vst.msk [vmem:[#allocation3 + $0x18] sm:$0xff] %vm828, %v1424
      %1445 = vst.msk [vmem:[#allocation3 + $0x20] sm:$0xff] %vm828, %v1426
      %1446 = vst.msk [vmem:[#allocation3 + $0x28] sm:$0xff] %vm828, %v1428
      %1447 = vst.msk [vmem:[#allocation3 + $0x30] sm:$0xff] %vm828, %v1430
      %1448 = vst.msk [vmem:[#allocation3 + $0x38] sm:$0xff] %vm828, %v1432
      %v1449 = vld [vmem:[%s787 + $0x1] sm:$0xff]
      %v1450 = vld [vmem:[%s787 + $0x11] sm:$0xff]
      %v1451 = vld [vmem:[%s787 + $0x21] sm:$0xff]
      %v1452 = vld [vmem:[%s787 + $0x31] sm:$0xff]
      %v1453 = vld [vmem:[%s787 + $0x41] sm:$0xff]
      %v1454 = vld [vmem:[%s787 + $0x51] sm:$0xff]
      %v1455 = vld [vmem:[%s787 + $0x61] sm:$0xff]
      %v1456 = vld [vmem:[%s787 + $0x71] sm:$0xff]
      %1465 = vrot.lane.b32.xlu0 %v1449, 56
      %v1466 = vpop.permute.xlu0 %1465
      %1467 = vrot.lane.b32.xlu0 %v1450, 56
      %v1468 = vpop.permute.xlu0 %1467
      %1469 = vrot.lane.b32.xlu0 %v1451, 56
      %v1470 = vpop.permute.xlu0 %1469
      %1471 = vrot.lane.b32.xlu0 %v1452, 56
      %v1472 = vpop.permute.xlu0 %1471
      %1473 = vrot.lane.b32.xlu0 %v1453, 56
      %v1474 = vpop.permute.xlu0 %1473
      %1475 = vrot.lane.b32.xlu0 %v1454, 56
      %v1476 = vpop.permute.xlu0 %1475
      %1477 = vrot.lane.b32.xlu0 %v1455, 56
      %v1478 = vpop.permute.xlu0 %1477
      %1479 = vrot.lane.b32.xlu0 %v1456, 56
      %v1480 = vpop.permute.xlu0 %1479
      %1489 = vst.msk [vmem:[#allocation3] sm:$0xff] %vm877, %v1466
      %1490 = vst.msk [vmem:[#allocation3 + $0x8] sm:$0xff] %vm877, %v1468
      %1491 = vst.msk [vmem:[#allocation3 + $0x10] sm:$0xff] %vm877, %v1470
      %1492 = vst.msk [vmem:[#allocation3 + $0x18] sm:$0xff] %vm877, %v1472
      %1493 = vst.msk [vmem:[#allocation3 + $0x20] sm:$0xff] %vm877, %v1474
      %1494 = vst.msk [vmem:[#allocation3 + $0x28] sm:$0xff] %vm877, %v1476
      %1495 = vst.msk [vmem:[#allocation3 + $0x30] sm:$0xff] %vm877, %v1478
      %1496 = vst.msk [vmem:[#allocation3 + $0x38] sm:$0xff] %vm877, %v1480
      %v1497 = vld [vmem:[%s787 + $0x2] sm:$0xff]
      %v1498 = vld [vmem:[%s787 + $0x12] sm:$0xff]
      %v1499 = vld [vmem:[%s787 + $0x22] sm:$0xff]
      %v1500 = vld [vmem:[%s787 + $0x32] sm:$0xff]
      %v1501 = vld [vmem:[%s787 + $0x42] sm:$0xff]
      %v1502 = vld [vmem:[%s787 + $0x52] sm:$0xff]
      %v1503 = vld [vmem:[%s787 + $0x62] sm:$0xff]
      %v1504 = vld [vmem:[%s787 + $0x72] sm:$0xff]
      %1513 = vrot.lane.b32.xlu0 %v1497, 64
      %v1514 = vpop.permute.xlu0 %1513
      %1515 = vrot.lane.b32.xlu0 %v1498, 64
      %v1516 = vpop.permute.xlu0 %1515
      %1517 = vrot.lane.b32.xlu0 %v1499, 64
      %v1518 = vpop.permute.xlu0 %1517
      %1519 = vrot.lane.b32.xlu0 %v1500, 64
      %v1520 = vpop.permute.xlu0 %1519
      %1521 = vrot.lane.b32.xlu0 %v1501, 64
      %v1522 = vpop.permute.xlu0 %1521
      %1523 = vrot.lane.b32.xlu0 %v1502, 64
      %v1524 = vpop.permute.xlu0 %1523
      %1525 = vrot.lane.b32.xlu0 %v1503, 64
      %v1526 = vpop.permute.xlu0 %1525
      %1527 = vrot.lane.b32.xlu0 %v1504, 64
      %v1528 = vpop.permute.xlu0 %1527
      %1537 = vst.msk [vmem:[#allocation3] sm:$0xff] %vm926, %v1514
      %1538 = vst.msk [vmem:[#allocation3 + $0x8] sm:$0xff] %vm926, %v1516
      %1539 = vst.msk [vmem:[#allocation3 + $0x10] sm:$0xff] %vm926, %v1518
      %1540 = vst.msk [vmem:[#allocation3 + $0x18] sm:$0xff] %vm926, %v1520
      %1541 = vst.msk [vmem:[#allocation3 + $0x20] sm:$0xff] %vm926, %v1522
      %1542 = vst.msk [vmem:[#allocation3 + $0x28] sm:$0xff] %vm926, %v1524
      %1543 = vst.msk [vmem:[#allocation3 + $0x30] sm:$0xff] %vm926, %v1526
      %1544 = vst.msk [vmem:[#allocation3 + $0x38] sm:$0xff] %vm926, %v1528
      %v1545 = vld [vmem:[#allocation3] sm:$0xff]
      %v1546 = vld [vmem:[#allocation3 + $0x8] sm:$0xff]
      %v1547 = vld [vmem:[#allocation3 + $0x10] sm:$0xff]
      %v1548 = vld [vmem:[#allocation3 + $0x18] sm:$0xff]
      %v1549 = vld [vmem:[#allocation3 + $0x20] sm:$0xff]
      %v1550 = vld [vmem:[#allocation3 + $0x28] sm:$0xff]
      %v1551 = vld [vmem:[#allocation3 + $0x30] sm:$0xff]
      %v1552 = vld [vmem:[#allocation3 + $0x38] sm:$0xff]
      %v1553 = vld [vmem:[%s5] sm:$0xff]
      %v1554 = vld [vmem:[%s5 + $0x8] sm:$0xff]
      %v1555 = vld [vmem:[%s5 + $0x10] sm:$0xff]
      %v1556 = vld [vmem:[%s5 + $0x18] sm:$0xff]
      %v1557 = vld [vmem:[%s5 + $0x20] sm:$0xff]
      %v1558 = vld [vmem:[%s5 + $0x28] sm:$0xff]
      %v1559 = vld [vmem:[%s5 + $0x30] sm:$0xff]
      %v1560 = vld [vmem:[%s5 + $0x38] sm:$0xff]
      %v1561 = vld [vmem:[%s5 + $0x40] sm:$0xff]
      %v1562 = vld [vmem:[%s6] sm:$0x1]
      %v1564 = vlaneseq
      %v1565 = vshrl.u32 %v1564, 7
      %v1566 = vsub.s32 0, %v1565
      %v1567 = vrot.slane %v1562, %v1566
      %v1570 = vsel %vm959, %v1545, 0
      %v1573 = vsel %vm959, %v1546, 0
      %v1576 = vsel %vm959, %v1547, 0
      %v1579 = vsel %vm959, %v1548, 0
      %v1582 = vsel %vm959, %v1549, 0
      %v1585 = vsel %vm959, %v1550, 0
      %v1588 = vsel %vm959, %v1551, 0
      %v1591 = vsel %vm959, %v1552, 0
      %1593 = vmatprep.subr.mxu0 0.0
      %1594 = vmatpush1.msra.mxu0 %v1553
      %1595 = vmatprep.subr.mxu0 0.0
      %1596 = vmatpush1.msra.mxu0 %v1554
      %1597 = vmatprep.subr.mxu0 0.0
      %1598 = vmatpush1.msra.mxu0 %v1555
      %1599 = vmatprep.subr.mxu0 0.0
      %1600 = vmatpush1.msra.mxu0 %v1556
      %1601 = vmatprep.subr.mxu0 0.0
      %1602 = vmatpush1.msra.mxu0 %v1557
      %1603 = vmatprep.subr.mxu0 0.0
      %1604 = vmatpush1.msra.mxu0 %v1558
      %1605 = vmatprep.subr.mxu0 0.0
      %1606 = vmatpush1.msra.mxu0 %v1559
      %1607 = vmatprep.subr.mxu0 0.0
      %1608 = vmatpush1.msra.mxu0 %v1560
      %1609 = vmatprep.subr.mxu0 0.0
      %1610 = vmatpush1.msra.mxu0 %v1561
      %1611 = vmatprep.subr.mxu0 0.0
      %1612 = vmatpush1.msra.mxu0 0.0
      %1613 = vmatprep.subr.mxu0 0.0
      %1614 = vmatpush1.msra.mxu0 0.0
      %1615 = vmatprep.subr.mxu0 0.0
      %1616 = vmatpush1.msra.mxu0 0.0
      %1617 = vmatprep.subr.mxu0 0.0
      %1618 = vmatpush1.msra.mxu0 0.0
      %1619 = vmatprep.subr.mxu0 0.0
      %1620 = vmatpush1.msra.mxu0 0.0
      %1621 = vmatprep.subr.mxu0 0.0
      %1622 = vmatpush1.msra.mxu0 0.0
      %1623 = vmatprep.subr.mxu0 0.0
      %1624 = vmatpush1.msra.mxu0 0.0
      %1625 = vmatprep.subr.mxu0 0.0
      %1626 = vmatpush1.msra.mxu0 0.0
      %1627 = vmatprep.subr.mxu0 0.0
      %1628 = vmatpush1.msra.mxu0 0.0
      %1629 = vmatprep.subr.mxu0 0.0
      %1630 = vmatpush1.msra.mxu0 0.0
      %1631 = vmatprep.subr.mxu0 0.0
      %1632 = vmatpush1.msra.mxu0 0.0
      %1633 = vmatprep.subr.mxu0 0.0
      %1634 = vmatpush1.msra.mxu0 0.0
      %1635 = vmatprep.subr.mxu0 0.0
      %1636 = vmatpush1.msra.mxu0 0.0
      %1637 = vmatprep.subr.mxu0 0.0
      %1638 = vmatpush1.msra.mxu0 0.0
      %1639 = vmatprep.subr.mxu0 0.0
      %1640 = vmatpush1.msra.mxu0 0.0
      %1641 = vmatprep.subr.mxu0 0.0
      %1642 = vmatpush1.msra.mxu0 0.0
      %1643 = vmatprep.subr.mxu0 0.0
      %1644 = vmatpush1.msra.mxu0 0.0
      %1645 = vmatprep.subr.mxu0 0.0
      %1646 = vmatpush1.msra.mxu0 0.0
      %1647 = vmatprep.subr.mxu0 0.0
      %1648 = vmatpush1.msra.mxu0 0.0
      %1649 = vmatprep.subr.mxu0 0.0
      %1650 = vmatpush1.msra.mxu0 0.0
      %1651 = vmatprep.subr.mxu0 0.0
      %1652 = vmatpush1.msra.mxu0 0.0
      %1653 = vmatprep.subr.mxu0 0.0
      %1654 = vmatpush1.msra.mxu0 0.0
      %1655 = vmatprep.subr.mxu0 0.0
      %1656 = vmatpush1.msra.mxu0 0.0
      %1657 = vmatprep.mubr.f32.mxu0 0.0
      %1658 = vmatmul.mubr.f32.gmra.mrb[0].mxu0 %v1570
      %v1659 = vpop.f32.mrb[0].mxu0
      %v1660 = vadd.f32 %v1567, %v1659
      %v1661 = vpop.f32.mrb[0].mxu0
      %1662 = vmatprep.mubr.f32.mxu0 0.0
      %1663 = vmatmul.mubr.f32.gmra.mrb[0].mxu0 %v1573
      %v1664 = vpop.f32.mrb[0].mxu0
      %v1665 = vadd.f32 %v1567, %v1664
      %v1666 = vpop.f32.mrb[0].mxu0
      %1667 = vmatprep.mubr.f32.mxu0 0.0
      %1668 = vmatmul.mubr.f32.gmra.mrb[0].mxu0 %v1576
      %v1669 = vpop.f32.mrb[0].mxu0
      %v1670 = vadd.f32 %v1567, %v1669
      %v1671 = vpop.f32.mrb[0].mxu0
      %1672 = vmatprep.mubr.f32.mxu0 0.0
      %1673 = vmatmul.mubr.f32.gmra.mrb[0].mxu0 %v1579
      %v1674 = vpop.f32.mrb[0].mxu0
      %v1675 = vadd.f32 %v1567, %v1674
      %v1676 = vpop.f32.mrb[0].mxu0
      %1677 = vmatprep.mubr.f32.mxu0 0.0
      %1678 = vmatmul.mubr.f32.gmra.mrb[0].mxu0 %v1582
      %v1679 = vpop.f32.mrb[0].mxu0
      %v1680 = vadd.f32 %v1567, %v1679
      %v1681 = vpop.f32.mrb[0].mxu0
      %1682 = vmatprep.mubr.f32.mxu0 0.0
      %1683 = vmatmul.mubr.f32.gmra.mrb[0].mxu0 %v1585
      %v1684 = vpop.f32.mrb[0].mxu0
      %v1685 = vadd.f32 %v1567, %v1684
      %v1686 = vpop.f32.mrb[0].mxu0
      %1687 = vmatprep.mubr.f32.mxu0 0.0
      %1688 = vmatmul.mubr.f32.gmra.mrb[0].mxu0 %v1588
      %v1689 = vpop.f32.mrb[0].mxu0
      %v1690 = vadd.f32 %v1567, %v1689
      %v1691 = vpop.f32.mrb[0].mxu0
      %1692 = vmatprep.mubr.f32.mxu0 0.0
      %1693 = vmatmul.mubr.f32.gmra.mrb[0].mxu0 %v1591
      %v1694 = vpop.f32.mrb[0].mxu0
      %v1695 = vadd.f32 %v1567, %v1694
      %v1696 = vpop.f32.mrb[0].mxu0
      %1697 = vdwg.mxu0
      %v1698 = vmax.f32 %v1660, 0.0
      %v1699 = vmax.f32 %v1665, 0.0
      %v1700 = vmax.f32 %v1670, 0.0
      %v1701 = vmax.f32 %v1675, 0.0
      %v1702 = vmax.f32 %v1680, 0.0
      %v1703 = vmax.f32 %v1685, 0.0
      %v1704 = vmax.f32 %v1690, 0.0
      %v1705 = vmax.f32 %v1695, 0.0
      %1706 = vst.msk [vmem:[%s517 + $0x1] sm:$0xff] %vm333, %v1698
      %1707 = vst.msk [vmem:[%s517 + $0x11] sm:$0xff] %vm333, %v1699
      %1708 = vst.msk [vmem:[%s517 + $0x21] sm:$0xff] %vm333, %v1700
      %1709 = vst.msk [vmem:[%s517 + $0x31] sm:$0xff] %vm333, %v1701
      %1710 = vst.msk [vmem:[%s517 + $0x41] sm:$0xff] %vm333, %v1702
      %1711 = vst.msk [vmem:[%s517 + $0x51] sm:$0xff] %vm333, %v1703
      %1712 = vst.msk [vmem:[%s517 + $0x61] sm:$0xff] %vm333, %v1704
      %1713 = vst.msk [vmem:[%s517 + $0x71] sm:$0xff] %vm333, %v1705
      %v1714 = vld [vmem:[#allocation2] sm:$0xff]
      %v1715 = vld [vmem:[#allocation2 + $0x10] sm:$0xff]
      %v1716 = vld [vmem:[#allocation2 + $0x20] sm:$0xff]
      %v1717 = vld [vmem:[#allocation2 + $0x30] sm:$0xff]
      %v1718 = vld [vmem:[#allocation2 + $0x40] sm:$0xff]
      %v1719 = vld [vmem:[#allocation2 + $0x50] sm:$0xff]
      %v1720 = vld [vmem:[#allocation2 + $0x60] sm:$0xff]
      %v1721 = vld [vmem:[#allocation2 + $0x70] sm:$0xff]
      %1722 = vst.msk [vmem:[#allocation3] sm:$0xff] %vm333, %v1714
      %1723 = vst.msk [vmem:[#allocation3 + $0x8] sm:$0xff] %vm333, %v1715
      %1724 = vst.msk [vmem:[#allocation3 + $0x10] sm:$0xff] %vm333, %v1716
      %1725 = vst.msk [vmem:[#allocation3 + $0x18] sm:$0xff] %vm333, %v1717
      %1726 = vst.msk [vmem:[#allocation3 + $0x20] sm:$0xff] %vm333, %v1718
      %1727 = vst.msk [vmem:[#allocation3 + $0x28] sm:$0xff] %vm333, %v1719
      %1728 = vst.msk [vmem:[#allocation3 + $0x30] sm:$0xff] %vm333, %v1720
      %1729 = vst.msk [vmem:[#allocation3 + $0x38] sm:$0xff] %vm333, %v1721
      %v1730 = vld [vmem:[#allocation2 + $0x1] sm:$0xff]
      %v1731 = vld [vmem:[#allocation2 + $0x11] sm:$0xff]
      %v1732 = vld [vmem:[#allocation2 + $0x21] sm:$0xff]
      %v1733 = vld [vmem:[#allocation2 + $0x31] sm:$0xff]
      %v1734 = vld [vmem:[#allocation2 + $0x41] sm:$0xff]
      %v1735 = vld [vmem:[#allocation2 + $0x51] sm:$0xff]
      %v1736 = vld [vmem:[#allocation2 + $0x61] sm:$0xff]
      %v1737 = vld [vmem:[#allocation2 + $0x71] sm:$0xff]
      %1746 = vrot.lane.b32.xlu0 %v1730, 8
      %v1747 = vpop.permute.xlu0 %1746
      %1748 = vrot.lane.b32.xlu0 %v1731, 8
      %v1749 = vpop.permute.xlu0 %1748
      %1750 = vrot.lane.b32.xlu0 %v1732, 8
      %v1751 = vpop.permute.xlu0 %1750
      %1752 = vrot.lane.b32.xlu0 %v1733, 8
      %v1753 = vpop.permute.xlu0 %1752
      %1754 = vrot.lane.b32.xlu0 %v1734, 8
      %v1755 = vpop.permute.xlu0 %1754
      %1756 = vrot.lane.b32.xlu0 %v1735, 8
      %v1757 = vpop.permute.xlu0 %1756
      %1758 = vrot.lane.b32.xlu0 %v1736, 8
      %v1759 = vpop.permute.xlu0 %1758
      %1760 = vrot.lane.b32.xlu0 %v1737, 8
      %v1761 = vpop.permute.xlu0 %1760
      %1770 = vst.msk [vmem:[#allocation3] sm:$0xff] %vm582, %v1747
      %1771 = vst.msk [vmem:[#allocation3 + $0x8] sm:$0xff] %vm582, %v1749
      %1772 = vst.msk [vmem:[#allocation3 + $0x10] sm:$0xff] %vm582, %v1751
      %1773 = vst.msk [vmem:[#allocation3 + $0x18] sm:$0xff] %vm582, %v1753
      %1774 = vst.msk [vmem:[#allocation3 + $0x20] sm:$0xff] %vm582, %v1755
      %1775 = vst.msk [vmem:[#allocation3 + $0x28] sm:$0xff] %vm582, %v1757
      %1776 = vst.msk [vmem:[#allocation3 + $0x30] sm:$0xff] %vm582, %v1759
      %1777 = vst.msk [vmem:[#allocation3 + $0x38] sm:$0xff] %vm582, %v1761
      %v1778 = vld [vmem:[#allocation2 + $0x2] sm:$0xff]
      %v1779 = vld [vmem:[#allocation2 + $0x12] sm:$0xff]
      %v1780 = vld [vmem:[#allocation2 + $0x22] sm:$0xff]
      %v1781 = vld [vmem:[#allocation2 + $0x32] sm:$0xff]
      %v1782 = vld [vmem:[#allocation2 + $0x42] sm:$0xff]
      %v1783 = vld [vmem:[#allocation2 + $0x52] sm:$0xff]
      %v1784 = vld [vmem:[#allocation2 + $0x62] sm:$0xff]
      %v1785 = vld [vmem:[#allocation2 + $0x72] sm:$0xff]
      %1794 = vrot.lane.b32.xlu0 %v1778, 16
      %v1795 = vpop.permute.xlu0 %1794
      %1796 = vrot.lane.b32.xlu0 %v1779, 16
      %v1797 = vpop.permute.xlu0 %1796
      %1798 = vrot.lane.b32.xlu0 %v1780, 16
      %v1799 = vpop.permute.xlu0 %1798
      %1800 = vrot.lane.b32.xlu0 %v1781, 16
      %v1801 = vpop.permute.xlu0 %1800
      %1802 = vrot.lane.b32.xlu0 %v1782, 16
      %v1803 = vpop.permute.xlu0 %1802
      %1804 = vrot.lane.b32.xlu0 %v1783, 16
      %v1805 = vpop.permute.xlu0 %1804
      %1806 = vrot.lane.b32.xlu0 %v1784, 16
      %v1807 = vpop.permute.xlu0 %1806
      %1808 = vrot.lane.b32.xlu0 %v1785, 16
      %v1809 = vpop.permute.xlu0 %1808
      %1818 = vst.msk [vmem:[#allocation3] sm:$0xff] %vm631, %v1795
      %1819 = vst.msk [vmem:[#allocation3 + $0x8] sm:$0xff] %vm631, %v1797
      %1820 = vst.msk [vmem:[#allocation3 + $0x10] sm:$0xff] %vm631, %v1799
      %1821 = vst.msk [vmem:[#allocation3 + $0x18] sm:$0xff] %vm631, %v1801
      %1822 = vst.msk [vmem:[#allocation3 + $0x20] sm:$0xff] %vm631, %v1803
      %1823 = vst.msk [vmem:[#allocation3 + $0x28] sm:$0xff] %vm631, %v1805
      %1824 = vst.msk [vmem:[#allocation3 + $0x30] sm:$0xff] %vm631, %v1807
      %1825 = vst.msk [vmem:[#allocation3 + $0x38] sm:$0xff] %vm631, %v1809
      %v1826 = vld [vmem:[%s517] sm:$0xff]
      %v1827 = vld [vmem:[%s517 + $0x10] sm:$0xff]
      %v1828 = vld [vmem:[%s517 + $0x20] sm:$0xff]
      %v1829 = vld [vmem:[%s517 + $0x30] sm:$0xff]
      %v1830 = vld [vmem:[%s517 + $0x40] sm:$0xff]
      %v1831 = vld [vmem:[%s517 + $0x50] sm:$0xff]
      %v1832 = vld [vmem:[%s517 + $0x60] sm:$0xff]
      %v1833 = vld [vmem:[%s517 + $0x70] sm:$0xff]
      %1842 = vrot.lane.b32.xlu0 %v1826, 24
      %v1843 = vpop.permute.xlu0 %1842
      %1844 = vrot.lane.b32.xlu0 %v1827, 24
      %v1845 = vpop.permute.xlu0 %1844
      %1846 = vrot.lane.b32.xlu0 %v1828, 24
      %v1847 = vpop.permute.xlu0 %1846
      %1848 = vrot.lane.b32.xlu0 %v1829, 24
      %v1849 = vpop.permute.xlu0 %1848
      %1850 = vrot.lane.b32.xlu0 %v1830, 24
      %v1851 = vpop.permute.xlu0 %1850
      %1852 = vrot.lane.b32.xlu0 %v1831, 24
      %v1853 = vpop.permute.xlu0 %1852
      %1854 = vrot.lane.b32.xlu0 %v1832, 24
      %v1855 = vpop.permute.xlu0 %1854
      %1856 = vrot.lane.b32.xlu0 %v1833, 24
      %v1857 = vpop.permute.xlu0 %1856
      %1866 = vst.msk [vmem:[#allocation3] sm:$0xff] %vm680, %v1843
      %1867 = vst.msk [vmem:[#allocation3 + $0x8] sm:$0xff] %vm680, %v1845
      %1868 = vst.msk [vmem:[#allocation3 + $0x10] sm:$0xff] %vm680, %v1847
      %1869 = vst.msk [vmem:[#allocation3 + $0x18] sm:$0xff] %vm680, %v1849
      %1870 = vst.msk [vmem:[#allocation3 + $0x20] sm:$0xff] %vm680, %v1851
      %1871 = vst.msk [vmem:[#allocation3 + $0x28] sm:$0xff] %vm680, %v1853
      %1872 = vst.msk [vmem:[#allocation3 + $0x30] sm:$0xff] %vm680, %v1855
      %1873 = vst.msk [vmem:[#allocation3 + $0x38] sm:$0xff] %vm680, %v1857
      %v1874 = vld [vmem:[%s517 + $0x1] sm:$0xff]
      %v1875 = vld [vmem:[%s517 + $0x11] sm:$0xff]
      %v1876 = vld [vmem:[%s517 + $0x21] sm:$0xff]
      %v1877 = vld [vmem:[%s517 + $0x31] sm:$0xff]
      %v1878 = vld [vmem:[%s517 + $0x41] sm:$0xff]
      %v1879 = vld [vmem:[%s517 + $0x51] sm:$0xff]
      %v1880 = vld [vmem:[%s517 + $0x61] sm:$0xff]
      %v1881 = vld [vmem:[%s517 + $0x71] sm:$0xff]
      %1890 = vrot.lane.b32.xlu0 %v1874, 32
      %v1891 = vpop.permute.xlu0 %1890
      %1892 = vrot.lane.b32.xlu0 %v1875, 32
      %v1893 = vpop.permute.xlu0 %1892
      %1894 = vrot.lane.b32.xlu0 %v1876, 32
      %v1895 = vpop.permute.xlu0 %1894
      %1896 = vrot.lane.b32.xlu0 %v1877, 32
      %v1897 = vpop.permute.xlu0 %1896
      %1898 = vrot.lane.b32.xlu0 %v1878, 32
      %v1899 = vpop.permute.xlu0 %1898
      %1900 = vrot.lane.b32.xlu0 %v1879, 32
      %v1901 = vpop.permute.xlu0 %1900
      %1902 = vrot.lane.b32.xlu0 %v1880, 32
      %v1903 = vpop.permute.xlu0 %1902
      %1904 = vrot.lane.b32.xlu0 %v1881, 32
      %v1905 = vpop.permute.xlu0 %1904
      %1914 = vst.msk [vmem:[#allocation3] sm:$0xff] %vm729, %v1891
      %1915 = vst.msk [vmem:[#allocation3 + $0x8] sm:$0xff] %vm729, %v1893
      %1916 = vst.msk [vmem:[#allocation3 + $0x10] sm:$0xff] %vm729, %v1895
      %1917 = vst.msk [vmem:[#allocation3 + $0x18] sm:$0xff] %vm729, %v1897
      %1918 = vst.msk [vmem:[#allocation3 + $0x20] sm:$0xff] %vm729, %v1899
      %1919 = vst.msk [vmem:[#allocation3 + $0x28] sm:$0xff] %vm729, %v1901
      %1920 = vst.msk [vmem:[#allocation3 + $0x30] sm:$0xff] %vm729, %v1903
      %1921 = vst.msk [vmem:[#allocation3 + $0x38] sm:$0xff] %vm729, %v1905
      %v1922 = vld [vmem:[%s517 + $0x2] sm:$0xff]
      %v1923 = vld [vmem:[%s517 + $0x12] sm:$0xff]
      %v1924 = vld [vmem:[%s517 + $0x22] sm:$0xff]
      %v1925 = vld [vmem:[%s517 + $0x32] sm:$0xff]
      %v1926 = vld [vmem:[%s517 + $0x42] sm:$0xff]
      %v1927 = vld [vmem:[%s517 + $0x52] sm:$0xff]
      %v1928 = vld [vmem:[%s517 + $0x62] sm:$0xff]
      %v1929 = vld [vmem:[%s517 + $0x72] sm:$0xff]
      %1938 = vrot.lane.b32.xlu0 %v1922, 40
      %v1939 = vpop.permute.xlu0 %1938
      %1940 = vrot.lane.b32.xlu0 %v1923, 40
      %v1941 = vpop.permute.xlu0 %1940
      %1942 = vrot.lane.b32.xlu0 %v1924, 40
      %v1943 = vpop.permute.xlu0 %1942
      %1944 = vrot.lane.b32.xlu0 %v1925, 40
      %v1945 = vpop.permute.xlu0 %1944
      %1946 = vrot.lane.b32.xlu0 %v1926, 40
      %v1947 = vpop.permute.xlu0 %1946
      %1948 = vrot.lane.b32.xlu0 %v1927, 40
      %v1949 = vpop.permute.xlu0 %1948
      %1950 = vrot.lane.b32.xlu0 %v1928, 40
      %v1951 = vpop.permute.xlu0 %1950
      %1952 = vrot.lane.b32.xlu0 %v1929, 40
      %v1953 = vpop.permute.xlu0 %1952
      %1962 = vst.msk [vmem:[#allocation3] sm:$0xff] %vm778, %v1939
      %1963 = vst.msk [vmem:[#allocation3 + $0x8] sm:$0xff] %vm778, %v1941
      %1964 = vst.msk [vmem:[#allocation3 + $0x10] sm:$0xff] %vm778, %v1943
      %1965 = vst.msk [vmem:[#allocation3 + $0x18] sm:$0xff] %vm778, %v1945
      %1966 = vst.msk [vmem:[#allocation3 + $0x20] sm:$0xff] %vm778, %v1947
      %1967 = vst.msk [vmem:[#allocation3 + $0x28] sm:$0xff] %vm778, %v1949
      %1968 = vst.msk [vmem:[#allocation3 + $0x30] sm:$0xff] %vm778, %v1951
      %1969 = vst.msk [vmem:[#allocation3 + $0x38] sm:$0xff] %vm778, %v1953
      %v1970 = vld [vmem:[%s787] sm:$0xff]
      %v1971 = vld [vmem:[%s787 + $0x10] sm:$0xff]
      %v1972 = vld [vmem:[%s787 + $0x20] sm:$0xff]
      %v1973 = vld [vmem:[%s787 + $0x30] sm:$0xff]
      %v1974 = vld [vmem:[%s787 + $0x40] sm:$0xff]
      %v1975 = vld [vmem:[%s787 + $0x50] sm:$0xff]
      %v1976 = vld [vmem:[%s787 + $0x60] sm:$0xff]
      %v1977 = vld [vmem:[%s787 + $0x70] sm:$0xff]
      %1986 = vrot.lane.b32.xlu0 %v1970, 48
      %v1987 = vpop.permute.xlu0 %1986
      %1988 = vrot.lane.b32.xlu0 %v1971, 48
      %v1989 = vpop.permute.xlu0 %1988
      %1990 = vrot.lane.b32.xlu0 %v1972, 48
      %v1991 = vpop.permute.xlu0 %1990
      %1992 = vrot.lane.b32.xlu0 %v1973, 48
      %v1993 = vpop.permute.xlu0 %1992
      %1994 = vrot.lane.b32.xlu0 %v1974, 48
      %v1995 = vpop.permute.xlu0 %1994
      %1996 = vrot.lane.b32.xlu0 %v1975, 48
      %v1997 = vpop.permute.xlu0 %1996
      %1998 = vrot.lane.b32.xlu0 %v1976, 48
      %v1999 = vpop.permute.xlu0 %1998
      %2000 = vrot.lane.b32.xlu0 %v1977, 48
      %v2001 = vpop.permute.xlu0 %2000
      %2010 = vst.msk [vmem:[#allocation3] sm:$0xff] %vm828, %v1987
      %2011 = vst.msk [vmem:[#allocation3 + $0x8] sm:$0xff] %vm828, %v1989
      %2012 = vst.msk [vmem:[#allocation3 + $0x10] sm:$0xff] %vm828, %v1991
      %2013 = vst.msk [vmem:[#allocation3 + $0x18] sm:$0xff] %vm828, %v1993
      %2014 = vst.msk [vmem:[#allocation3 + $0x20] sm:$0xff] %vm828, %v1995
      %2015 = vst.msk [vmem:[#allocation3 + $0x28] sm:$0xff] %vm828, %v1997
      %2016 = vst.msk [vmem:[#allocation3 + $0x30] sm:$0xff] %vm828, %v1999
      %2017 = vst.msk [vmem:[#allocation3 + $0x38] sm:$0xff] %vm828, %v2001
      %v2018 = vld [vmem:[%s787 + $0x1] sm:$0xff]
      %v2019 = vld [vmem:[%s787 + $0x11] sm:$0xff]
      %v2020 = vld [vmem:[%s787 + $0x21] sm:$0xff]
      %v2021 = vld [vmem:[%s787 + $0x31] sm:$0xff]
      %v2022 = vld [vmem:[%s787 + $0x41] sm:$0xff]
      %v2023 = vld [vmem:[%s787 + $0x51] sm:$0xff]
      %v2024 = vld [vmem:[%s787 + $0x61] sm:$0xff]
      %v2025 = vld [vmem:[%s787 + $0x71] sm:$0xff]
      %2034 = vrot.lane.b32.xlu0 %v2018, 56
      %v2035 = vpop.permute.xlu0 %2034
      %2036 = vrot.lane.b32.xlu0 %v2019, 56
      %v2037 = vpop.permute.xlu0 %2036
      %2038 = vrot.lane.b32.xlu0 %v2020, 56
      %v2039 = vpop.permute.xlu0 %2038
      %2040 = vrot.lane.b32.xlu0 %v2021, 56
      %v2041 = vpop.permute.xlu0 %2040
      %2042 = vrot.lane.b32.xlu0 %v2022, 56
      %v2043 = vpop.permute.xlu0 %2042
      %2044 = vrot.lane.b32.xlu0 %v2023, 56
      %v2045 = vpop.permute.xlu0 %2044
      %2046 = vrot.lane.b32.xlu0 %v2024, 56
      %v2047 = vpop.permute.xlu0 %2046
      %2048 = vrot.lane.b32.xlu0 %v2025, 56
      %v2049 = vpop.permute.xlu0 %2048
      %2058 = vst.msk [vmem:[#allocation3] sm:$0xff] %vm877, %v2035
      %2059 = vst.msk [vmem:[#allocation3 + $0x8] sm:$0xff] %vm877, %v2037
      %2060 = vst.msk [vmem:[#allocation3 + $0x10] sm:$0xff] %vm877, %v2039
      %2061 = vst.msk [vmem:[#allocation3 + $0x18] sm:$0xff] %vm877, %v2041
      %2062 = vst.msk [vmem:[#allocation3 + $0x20] sm:$0xff] %vm877, %v2043
      %2063 = vst.msk [vmem:[#allocation3 + $0x28] sm:$0xff] %vm877, %v2045
      %2064 = vst.msk [vmem:[#allocation3 + $0x30] sm:$0xff] %vm877, %v2047
      %2065 = vst.msk [vmem:[#allocation3 + $0x38] sm:$0xff] %vm877, %v2049
      %v2066 = vld [vmem:[%s787 + $0x2] sm:$0xff]
      %v2067 = vld [vmem:[%s787 + $0x12] sm:$0xff]
      %v2068 = vld [vmem:[%s787 + $0x22] sm:$0xff]
      %v2069 = vld [vmem:[%s787 + $0x32] sm:$0xff]
      %v2070 = vld [vmem:[%s787 + $0x42] sm:$0xff]
      %v2071 = vld [vmem:[%s787 + $0x52] sm:$0xff]
      %v2072 = vld [vmem:[%s787 + $0x62] sm:$0xff]
      %v2073 = vld [vmem:[%s787 + $0x72] sm:$0xff]
      %2082 = vrot.lane.b32.xlu0 %v2066, 64
      %v2083 = vpop.permute.xlu0 %2082
      %2084 = vrot.lane.b32.xlu0 %v2067, 64
      %v2085 = vpop.permute.xlu0 %2084
      %2086 = vrot.lane.b32.xlu0 %v2068, 64
      %v2087 = vpop.permute.xlu0 %2086
      %2088 = vrot.lane.b32.xlu0 %v2069, 64
      %v2089 = vpop.permute.xlu0 %2088
      %2090 = vrot.lane.b32.xlu0 %v2070, 64
      %v2091 = vpop.permute.xlu0 %2090
      %2092 = vrot.lane.b32.xlu0 %v2071, 64
      %v2093 = vpop.permute.xlu0 %2092
      %2094 = vrot.lane.b32.xlu0 %v2072, 64
      %v2095 = vpop.permute.xlu0 %2094
      %2096 = vrot.lane.b32.xlu0 %v2073, 64
      %v2097 = vpop.permute.xlu0 %2096
      %2106 = vst.msk [vmem:[#allocation3] sm:$0xff] %vm926, %v2083
      %2107 = vst.msk [vmem:[#allocation3 + $0x8] sm:$0xff] %vm926, %v2085
      %2108 = vst.msk [vmem:[#allocation3 + $0x10] sm:$0xff] %vm926, %v2087
      %2109 = vst.msk [vmem:[#allocation3 + $0x18] sm:$0xff] %vm926, %v2089
      %2110 = vst.msk [vmem:[#allocation3 + $0x20] sm:$0xff] %vm926, %v2091
      %2111 = vst.msk [vmem:[#allocation3 + $0x28] sm:$0xff] %vm926, %v2093
      %2112 = vst.msk [vmem:[#allocation3 + $0x30] sm:$0xff] %vm926, %v2095
      %2113 = vst.msk [vmem:[#allocation3 + $0x38] sm:$0xff] %vm926, %v2097
      %v2114 = vld [vmem:[#allocation3] sm:$0xff]
      %v2115 = vld [vmem:[#allocation3 + $0x8] sm:$0xff]
      %v2116 = vld [vmem:[#allocation3 + $0x10] sm:$0xff]
      %v2117 = vld [vmem:[#allocation3 + $0x18] sm:$0xff]
      %v2118 = vld [vmem:[#allocation3 + $0x20] sm:$0xff]
      %v2119 = vld [vmem:[#allocation3 + $0x28] sm:$0xff]
      %v2120 = vld [vmem:[#allocation3 + $0x30] sm:$0xff]
      %v2121 = vld [vmem:[#allocation3 + $0x38] sm:$0xff]
      %v2122 = vld [vmem:[%s7] sm:$0xff]
      %v2123 = vld [vmem:[%s7 + $0x8] sm:$0xff]
      %v2124 = vld [vmem:[%s7 + $0x10] sm:$0xff]
      %v2125 = vld [vmem:[%s7 + $0x18] sm:$0xff]
      %v2126 = vld [vmem:[%s7 + $0x20] sm:$0xff]
      %v2127 = vld [vmem:[%s7 + $0x28] sm:$0xff]
      %v2128 = vld [vmem:[%s7 + $0x30] sm:$0xff]
      %v2129 = vld [vmem:[%s7 + $0x38] sm:$0xff]
      %v2130 = vld [vmem:[%s7 + $0x40] sm:$0xff]
      %v2131 = vld [vmem:[%s8] sm:$0x1]
      %v2133 = vlaneseq
      %v2134 = vshrl.u32 %v2133, 7
      %v2135 = vsub.s32 0, %v2134
      %v2136 = vrot.slane %v2131, %v2135
      %v2139 = vsel %vm959, %v2114, 0
      %v2142 = vsel %vm959, %v2115, 0
      %v2145 = vsel %vm959, %v2116, 0
      %v2148 = vsel %vm959, %v2117, 0
      %v2151 = vsel %vm959, %v2118, 0
      %v2154 = vsel %vm959, %v2119, 0
      %v2157 = vsel %vm959, %v2120, 0
      %v2160 = vsel %vm959, %v2121, 0
      %2162 = vmatprep.subr.mxu0 0.0
      %2163 = vmatpush1.msra.mxu0 %v2122
      %2164 = vmatprep.subr.mxu0 0.0
      %2165 = vmatpush1.msra.mxu0 %v2123
      %2166 = vmatprep.subr.mxu0 0.0
      %2167 = vmatpush1.msra.mxu0 %v2124
      %2168 = vmatprep.subr.mxu0 0.0
      %2169 = vmatpush1.msra.mxu0 %v2125
      %2170 = vmatprep.subr.mxu0 0.0
      %2171 = vmatpush1.msra.mxu0 %v2126
      %2172 = vmatprep.subr.mxu0 0.0
      %2173 = vmatpush1.msra.mxu0 %v2127
      %2174 = vmatprep.subr.mxu0 0.0
      %2175 = vmatpush1.msra.mxu0 %v2128
      %2176 = vmatprep.subr.mxu0 0.0
      %2177 = vmatpush1.msra.mxu0 %v2129
      %2178 = vmatprep.subr.mxu0 0.0
      %2179 = vmatpush1.msra.mxu0 %v2130
      %2180 = vmatprep.subr.mxu0 0.0
      %2181 = vmatpush1.msra.mxu0 0.0
      %2182 = vmatprep.subr.mxu0 0.0
      %2183 = vmatpush1.msra.mxu0 0.0
      %2184 = vmatprep.subr.mxu0 0.0
      %2185 = vmatpush1.msra.mxu0 0.0
      %2186 = vmatprep.subr.mxu0 0.0
      %2187 = vmatpush1.msra.mxu0 0.0
      %2188 = vmatprep.subr.mxu0 0.0
      %2189 = vmatpush1.msra.mxu0 0.0
      %2190 = vmatprep.subr.mxu0 0.0
      %2191 = vmatpush1.msra.mxu0 0.0
      %2192 = vmatprep.subr.mxu0 0.0
      %2193 = vmatpush1.msra.mxu0 0.0
      %2194 = vmatprep.subr.mxu0 0.0
      %2195 = vmatpush1.msra.mxu0 0.0
      %2196 = vmatprep.subr.mxu0 0.0
      %2197 = vmatpush1.msra.mxu0 0.0
      %2198 = vmatprep.subr.mxu0 0.0
      %2199 = vmatpush1.msra.mxu0 0.0
      %2200 = vmatprep.subr.mxu0 0.0
      %2201 = vmatpush1.msra.mxu0 0.0
      %2202 = vmatprep.subr.mxu0 0.0
      %2203 = vmatpush1.msra.mxu0 0.0
      %2204 = vmatprep.subr.mxu0 0.0
      %2205 = vmatpush1.msra.mxu0 0.0
      %2206 = vmatprep.subr.mxu0 0.0
      %2207 = vmatpush1.msra.mxu0 0.0
      %2208 = vmatprep.subr.mxu0 0.0
      %2209 = vmatpush1.msra.mxu0 0.0
      %2210 = vmatprep.subr.mxu0 0.0
      %2211 = vmatpush1.msra.mxu0 0.0
      %2212 = vmatprep.subr.mxu0 0.0
      %2213 = vmatpush1.msra.mxu0 0.0
      %2214 = vmatprep.subr.mxu0 0.0
      %2215 = vmatpush1.msra.mxu0 0.0
      %2216 = vmatprep.subr.mxu0 0.0
      %2217 = vmatpush1.msra.mxu0 0.0
      %2218 = vmatprep.subr.mxu0 0.0
      %2219 = vmatpush1.msra.mxu0 0.0
      %2220 = vmatprep.subr.mxu0 0.0
      %2221 = vmatpush1.msra.mxu0 0.0
      %2222 = vmatprep.subr.mxu0 0.0
      %2223 = vmatpush1.msra.mxu0 0.0
      %2224 = vmatprep.subr.mxu0 0.0
      %2225 = vmatpush1.msra.mxu0 0.0
      %2226 = vmatprep.mubr.f32.mxu0 0.0
      %2227 = vmatmul.mubr.f32.gmra.mrb[0].mxu0 %v2139
      %v2228 = vpop.f32.mrb[0].mxu0
      %v2229 = vadd.f32 %v2136, %v2228
      %v2230 = vpop.f32.mrb[0].mxu0
      %2231 = vmatprep.mubr.f32.mxu0 0.0
      %2232 = vmatmul.mubr.f32.gmra.mrb[0].mxu0 %v2142
      %v2233 = vpop.f32.mrb[0].mxu0
      %v2234 = vadd.f32 %v2136, %v2233
      %v2235 = vpop.f32.mrb[0].mxu0
      %2236 = vmatprep.mubr.f32.mxu0 0.0
      %2237 = vmatmul.mubr.f32.gmra.mrb[0].mxu0 %v2145
      %v2238 = vpop.f32.mrb[0].mxu0
      %v2239 = vadd.f32 %v2136, %v2238
      %v2240 = vpop.f32.mrb[0].mxu0
      %2241 = vmatprep.mubr.f32.mxu0 0.0
      %2242 = vmatmul.mubr.f32.gmra.mrb[0].mxu0 %v2148
      %v2243 = vpop.f32.mrb[0].mxu0
      %v2244 = vadd.f32 %v2136, %v2243
      %v2245 = vpop.f32.mrb[0].mxu0
      %2246 = vmatprep.mubr.f32.mxu0 0.0
      %2247 = vmatmul.mubr.f32.gmra.mrb[0].mxu0 %v2151
      %v2248 = vpop.f32.mrb[0].mxu0
      %v2249 = vadd.f32 %v2136, %v2248
      %v2250 = vpop.f32.mrb[0].mxu0
      %2251 = vmatprep.mubr.f32.mxu0 0.0
      %2252 = vmatmul.mubr.f32.gmra.mrb[0].mxu0 %v2154
      %v2253 = vpop.f32.mrb[0].mxu0
      %v2254 = vadd.f32 %v2136, %v2253
      %v2255 = vpop.f32.mrb[0].mxu0
      %2256 = vmatprep.mubr.f32.mxu0 0.0
      %2257 = vmatmul.mubr.f32.gmra.mrb[0].mxu0 %v2157
      %v2258 = vpop.f32.mrb[0].mxu0
      %v2259 = vadd.f32 %v2136, %v2258
      %v2260 = vpop.f32.mrb[0].mxu0
      %2261 = vmatprep.mubr.f32.mxu0 0.0
      %2262 = vmatmul.mubr.f32.gmra.mrb[0].mxu0 %v2160
      %v2263 = vpop.f32.mrb[0].mxu0
      %v2264 = vadd.f32 %v2136, %v2263
      %v2265 = vpop.f32.mrb[0].mxu0
      %2266 = vdwg.mxu0
      %v2267 = vmul.f32 %v1129, 2.0
      %v2268 = vmul.f32 %v1130, 2.0
      %v2269 = vmul.f32 %v1131, 2.0
      %v2270 = vmul.f32 %v1132, 2.0
      %v2271 = vmul.f32 %v1133, 2.0
      %v2272 = vmul.f32 %v1134, 2.0
      %v2273 = vmul.f32 %v1135, 2.0
      %v2274 = vmul.f32 %v1136, 2.0
      %v2275 = vadd.f32 %v2267, %v2229
      %v2276 = vadd.f32 %v2268, %v2234
      %v2277 = vadd.f32 %v2269, %v2239
      %v2278 = vadd.f32 %v2270, %v2244
      %v2279 = vadd.f32 %v2271, %v2249
      %v2280 = vadd.f32 %v2272, %v2254
      %v2281 = vadd.f32 %v2273, %v2259
      %v2282 = vadd.f32 %v2274, %v2264
      %2283 = vst.msk [vmem:[%s332] sm:$0xff] %vm333, %v2275
      %2284 = vst.msk [vmem:[%s332 + $0x8] sm:$0xff] %vm333, %v2276
      %2285 = vst.msk [vmem:[%s332 + $0x10] sm:$0xff] %vm333, %v2277
      %2286 = vst.msk [vmem:[%s332 + $0x18] sm:$0xff] %vm333, %v2278
      %2287 = vst.msk [vmem:[%s332 + $0x20] sm:$0xff] %vm333, %v2279
      %2288 = vst.msk [vmem:[%s332 + $0x28] sm:$0xff] %vm333, %v2280
      %2289 = vst.msk [vmem:[%s332 + $0x30] sm:$0xff] %vm333, %v2281
      %2290 = vst.msk [vmem:[%s332 + $0x38] sm:$0xff] %vm333, %v2282
      %p2291 = scmp.lt.s32.totalorder %s20, 1
      %s2292 = scalar_select %p2291, %s20, 1
      %s2293 = smul.addr %s2292, 8
      %s2294 = smul.addr %s2293, 8
      %s2295 = scalar_lea.vmem %s9, %s2294
      // Predicated region
      $region57: #{tpu_custom_call.1} parent=55 // pred_check
        %p2296 = pneg %p232
      $region58: #{tpu_custom_call.1} parent=55 // pred_check_branch
        %2298 = sbr.rel (%p2296) target = $region60
      $region59: #{tpu_custom_call.1} parent=55 // pred_region
        _
      $region60: #{tpu_custom_call.1} parent=55 // pred_fallthru
        _
    $region56: #{tpu_custom_call.1} parent=5 // pred_fallthru
      _
    %p2299 = scmp.le.s32.totalorder 2, %s15
    // Predicated region
    $region61: #{tpu_custom_call.1} parent=5 // pred_check
      %p2300 = pneg %p2299
    $region62: #{tpu_custom_call.1} parent=5 // pred_check_branch
      %2302 = sbr.rel (%p2300) target = $region64
    $region63: #{tpu_custom_call.1} parent=5 // pred_region
      %s2303 = ssub.s32 %s15, 2
      // Predicated region
      $region65: #{tpu_custom_call.1} parent=63 // pred_check
        %p2304 = pneg %p238
      $region66: #{tpu_custom_call.1} parent=63 // pred_check_branch
        %2306 = sbr.rel (%p2304) target = $region68
      $region67: #{tpu_custom_call.1} parent=63 // pred_region
        %p2307 = scmp.lt.s32.totalorder %s21, 1
        %s2308 = scalar_select %p2307, %s21, 1
        %s2309 = smul.addr %s2308, 8
        %s2310 = smul.addr %s2309, 8
        %s2311 = scalar_lea.vmem %s9, %s2310
      $region68: #{tpu_custom_call.1} parent=63 // pred_fallthru
        _
    $region64: #{tpu_custom_call.1} parent=5 // pred_fallthru
      _
  $region6: #{tpu_custom_call.1} parent=0 // loop_footer
    %s19 = sadd.s32 1, %s15
  $region7: #{tpu_custom_call.1} parent=0 // loop_footer_branch
    %14 = sbr.rel target = $region3
  $region8: #{tpu_custom_call.1} parent=0 // loop_exit
    _

</llo_original>
